<compile_context>
chip_gen: v5e
topology: v5e:2x2
jax: 0.10.0
libtpu: 0.0.40
codegen_flags: <defaults>
</compile_context>

<pallas_src>
import math

import jax
import jax.numpy as jnp
from jax import lax
from jax.experimental import pallas as pl
from jax.experimental.pallas import tpu as pltpu

# ---------------- model dimensions (small, consistent with a decoder block) --
B = 2          # batch
S = 8          # decoder sequence length
SE = 8         # encoder sequence length
H = 32         # hidden size
NH = 4         # number of heads
DH = H // NH   # head dim
HD = NH * DH   # concatenated head dim (== H here)
F = 64         # FFN hidden size
EPS = 1e-5
NEG_INF = -1e9
BS = B * S     # decoder tokens (batch folded into rows)
BSE = B * SE   # encoder tokens


# ----------------------------------------------------------------------------
# Pallas kernel: one decoder block over the whole (batch-folded) problem.
# ----------------------------------------------------------------------------
def decoder_block_kernel(
    x_ref,          # (BS, H)    decoder input, batch folded into rows
    enc_ref,        # (BSE, H)   encoder outputs (state), batch folded
    wqkv_s_ref,     # (H, 3*HD)  fused self-attn q|k|v weights (q pre-scaled)
    bqkv_s_ref,     # (1, 3*HD)
    wo_s_ref,       # (HD, H)    fused self-attn output projection
    bo_s_ref,       # (1, H)
    wq_c_ref,       # (H, HD)    cross-attn q weights (pre-scaled)
    bq_c_ref,       # (1, HD)
    wkv_c_ref,      # (H, 2*HD)  fused cross-attn k|v weights
    bkv_c_ref,      # (1, 2*HD)
    wo_c_ref,       # (HD, H)
    bo_c_ref,       # (1, H)
    w1_ref,         # (H, F)
    b1_ref,         # (1, F)
    w2_ref,         # (F, H)
    b2_ref,         # (1, H)
    ln_g_ref,       # (3, 1, H)  layer-norm gains (3 norms in the block)
    ln_b_ref,       # (3, 1, H)  layer-norm biases
    self_bias_ref,  # (BS, BS)   additive mask: block-diag batch + causal
    cross_bias_ref, # (BS, BSE)  additive mask: block-diag batch
    out_ref,        # (BS, H)
):
  xf = x_ref[...]                 # (BS, H)
  encf = enc_ref[...]             # (BSE, H)
  self_bias = self_bias_ref[...]  # (BS, BS)
  cross_bias = cross_bias_ref[...]

  def layer_norm(y, idx):
    # E[y^2] - mu^2 form: the two lane reductions have no serial dependency.
    mu = jnp.mean(y, axis=-1, keepdims=True)
    ms = jnp.mean(y * y, axis=-1, keepdims=True)
    var = ms - mu * mu
    return (y - mu) * lax.rsqrt(var + EPS) * ln_g_ref[idx] + ln_b_ref[idx]

  def split_heads(a, base):
    # (rows, .. >= base+HD) -> (NH, rows, DH): static lane slices + leading
    # stack (no major<->minor transpose, which Mosaic handles less well).
    return jnp.stack(
        [a[:, base + h * DH: base + (h + 1) * DH] for h in range(NH)], axis=0)

  def attention(q_h, k_h, v_h, bias, wo_ref, bo_ref):
    # q_h/k_h/v_h: (NH, rows, DH).  Single head-batched score matmul, single
    # masked softmax chain, single head-batched P@V.
    s = jnp.einsum('hqd,hkd->hqk', q_h, k_h,
                   preferred_element_type=jnp.float32)
    s = s + bias[None]                         # additive -1e9 mask
    m = jnp.max(s, axis=-1, keepdims=True)
    p = jnp.exp(s - m)
    p = p / jnp.sum(p, axis=-1, keepdims=True)  # exact reciprocal
    o = jnp.einsum('hqk,hkd->hqd', p, v_h,
                   preferred_element_type=jnp.float32)
    # (NH, rows, DH) -> (rows, HD): leading-dim extracts + one lane concat,
    # then one fused output projection.
    o_cat = jnp.concatenate([o[h] for h in range(NH)], axis=-1)
    return jnp.dot(o_cat, wo_ref[...],
                   preferred_element_type=jnp.float32) + bo_ref[...]

  # 1) masked self-attention + Add&Norm  (one fused QKV matmul for all heads)
  qkv = jnp.dot(xf, wqkv_s_ref[...],
                preferred_element_type=jnp.float32) + bqkv_s_ref[...]
  y1 = attention(split_heads(qkv, 0),
                 split_heads(qkv, HD),
                 split_heads(qkv, 2 * HD),
                 self_bias, wo_s_ref, bo_s_ref)
  x1 = layer_norm(xf + y1, 0)

  # 2) encoder-decoder attention + Add&Norm  (Q from decoder, fused KV from
  #    encoder; weights were split at repack time so no weight slicing here)
  q_c = jnp.dot(x1, wq_c_ref[...],
                preferred_element_type=jnp.float32) + bq_c_ref[...]
  kv_c = jnp.dot(encf, wkv_c_ref[...],
                 preferred_element_type=jnp.float32) + bkv_c_ref[...]
  y2 = attention(split_heads(q_c, 0),
                 split_heads(kv_c, 0),
                 split_heads(kv_c, HD),
                 cross_bias, wo_c_ref, bo_c_ref)
  x2 = layer_norm(x1 + y2, 1)

  # 3) position-wise FFN + Add&Norm
  hdn = jnp.maximum(
      jnp.dot(x2, w1_ref[...], preferred_element_type=jnp.float32)
      + b1_ref[...], 0.0)
  y3 = jnp.dot(hdn, w2_ref[...], preferred_element_type=jnp.float32) \
      + b2_ref[...]
  # TODO(synk): with H=32 the final store is a masked (25%-lane) write; if the
  # block is ever scaled, keep H a multiple of 128 for an unmasked vst.
  out_ref[...] = layer_norm(x2 + y3, 2)


# ----------------------------------------------------------------------------
# One-time repacking (hoisted out of the forward hot path).
# ----------------------------------------------------------------------------
def repack_params(params):
  (wqkv_s, bqkv_s, wo_s, bo_s, wqkv_c, bqkv_c, wo_c, bo_c,
   w1, b1, w2, b2, ln_g, ln_b) = params
  scale = 1.0 / math.sqrt(DH)

  def pack_w(w):   # (k, NH, H, DH) -> (H, k*NH*DH), cols ordered (qkv, head, dh)
    k = w.shape[0]
    return jnp.transpose(w, (2, 0, 1, 3)).reshape(H, k * HD)

  def pack_b(b):   # (k, NH, 1, DH) -> (1, k*NH*DH)
    k = b.shape[0]
    return jnp.transpose(b, (2, 0, 1, 3)).reshape(1, k * HD)

  # Bake 1/sqrt(DH) into the q columns (weights AND biases).
  qscale = jnp.concatenate(
      [jnp.full((HD,), scale, jnp.float32),
       jnp.ones((2 * HD,), jnp.float32)])[None, :]
  wqkv_s_p = pack_w(wqkv_s) * qscale
  bqkv_s_p = pack_b(bqkv_s) * qscale

  # Cross attention: split q vs kv so the kernel never slices a weight.
  wq_c_p = jnp.transpose(wqkv_c[0], (1, 0, 2)).reshape(H, HD) * scale
  bq_c_p = jnp.transpose(bqkv_c[0], (1, 0, 2)).reshape(1, HD) * scale
  wkv_c_p = pack_w(wqkv_c[1:])
  bkv_c_p = pack_b(bqkv_c[1:])

  # Additive attention biases (batch folded into rows):
  #   self : same batch AND causal;  cross : same batch.
  r = jnp.arange(BS, dtype=jnp.int32)[:, None]
  c = jnp.arange(BS, dtype=jnp.int32)[None, :]
  self_ok = (r // S == c // S) & (c <= r)
  self_bias = jnp.where(self_ok, 0.0, NEG_INF).astype(jnp.float32)
  ck = jnp.arange(BSE, dtype=jnp.int32)[None, :]
  cross_ok = (r // S == ck // SE)
  cross_bias = jnp.where(cross_ok, 0.0, NEG_INF).astype(jnp.float32)

  return (wqkv_s_p, bqkv_s_p, wo_s.reshape(HD, H), bo_s,
          wq_c_p, bq_c_p, wkv_c_p, bkv_c_p, wo_c.reshape(HD, H), bo_c,
          w1, b1, w2, b2, ln_g, ln_b, self_bias, cross_bias)


# ----------------------------------------------------------------------------
# Forward wrapper: grid=(), everything resident in VMEM (footprint ~50 KB,
# far below the scoped VMEM limit on any generation; no pipelining machinery).
# ----------------------------------------------------------------------------
@jax.jit
def decoder_forward(x, enc_outputs, packed):
  """x: (B, S, H) f32, enc_outputs: (B, SE, H) f32 -> (B, S, H) f32."""
  xf = x.reshape(BS, H)
  ef = enc_outputs.reshape(BSE, H)
  n_in = 2 + len(packed)
  in_specs = [pl.BlockSpec(memory_space=pltpu.MemorySpace.VMEM)
              for _ in range(n_in)]
  out_spec = pl.BlockSpec(memory_space=pltpu.MemorySpace.VMEM)
  fn = pl.pallas_call(
      decoder_block_kernel,
      out_shape=jax.ShapeDtypeStruct((BS, H), jnp.float32),
      in_specs=in_specs,
      out_specs=out_spec,
  )
  return fn(xf, ef, *packed).reshape(B, S, H)


def init_state(enc_outputs):
  # Concrete realization of Decoder.init_state: the state is the encoder
  # output itself (attention-based decoder convention).
  return enc_outputs


# ----------------------------------------------------------------------------
# Deterministic parameter init (synthetic; no checkpoint loading).
# ----------------------------------------------------------------------------
def make_params(key):
  ks = jax.random.split(key, 16)
  n = lambda k, shape, s=0.05: (s * jax.random.normal(k, shape)).astype(
      jnp.float32)
  return (
      n(ks[0], (3, NH, H, DH)),   # wqkv_self
      n(ks[1], (3, NH, 1, DH)),   # bqkv_self
      n(ks[2], (NH, DH, H)),      # wo_self
      n(ks[3], (1, H)),           # bo_self
      n(ks[4], (3, NH, H, DH)),   # wqkv_cross
      n(ks[5], (3, NH, 1, DH)),   # bqkv_cross
      n(ks[6], (NH, DH, H)),      # wo_cross
      n(ks[7], (1, H)),           # bo_cross
      n(ks[8], (H, F)),           # w1
      n(ks[9], (1, F)),           # b1
      n(ks[10], (F, H)),          # w2
      n(ks[11], (1, H)),          # b2
      jnp.ones((3, 1, H), jnp.float32),   # ln gains
      jnp.zeros((3, 1, H), jnp.float32),  # ln biases
  )


# ----------------------------------------------------------------------------
# Pure-JAX reference (uses the *original* parameter convention).
# ----------------------------------------------------------------------------
def reference(x, enc, params):
  (wqkv_s, bqkv_s, wo_s, bo_s, wqkv_c, bqkv_c, wo_c, bo_c,
   w1, b1, w2, b2, ln_g, ln_b) = params
  scale = 1.0 / math.sqrt(DH)

  def layer_norm(y, i):
    mu = jnp.mean(y, axis=-1, keepdims=True)
    var = jnp.mean((y - mu) ** 2, axis=-1, keepdims=True)
    return (y - mu) * lax.rsqrt(var + EPS) * ln_g[i] + ln_b[i]

  def mha(qx, kx, wqkv, bqkv, wo, bo, causal):
    q = jnp.einsum('bsh,nhd->bnsd', qx, wqkv[0]) + bqkv[0][None]
    k = jnp.einsum('bsh,nhd->bnsd', kx, wqkv[1]) + bqkv[1][None]
    v = jnp.einsum('bsh,nhd->bnsd', kx, wqkv[2]) + bqkv[2][None]
    s = jnp.einsum('bnqd,bnkd->bnqk', q, k) * scale
    if causal:
      mask = jnp.tril(jnp.ones((q.shape[2], k.shape[2]), bool))
      s = jnp.where(mask[None, None], s, NEG_INF)
    p = jax.nn.softmax(s, axis=-1)
    o = jnp.einsum('bnqk,bnkd->bnqd', p, v)
    return jnp.einsum('bnqd,ndh->bqh', o, wo) + bo[None]

  y1 = mha(x, x, wqkv_s, bqkv_s, wo_s, bo_s, True)
  x1 = layer_norm(x + y1, 0)
  y2 = mha(x1, enc, wqkv_c, bqkv_c, wo_c, bo_c, False)
  x2 = layer_norm(x1 + y2, 1)
  hdn = jnp.maximum(jnp.einsum('bsh,hf->bsf', x2, w1) + b1[None], 0.0)
  y3 = jnp.einsum('bsf,fh->bsh', hdn, w2) + b2[None]
  return layer_norm(x2 + y3, 2)


if __name__ == "__main__":
  key = jax.random.PRNGKey(0)
  kx, ke, kp = jax.random.split(key, 3)
  x = jax.random.normal(kx, (B, S, H), dtype=jnp.float32)
  enc_outputs = jax.random.normal(ke, (B, SE, H), dtype=jnp.float32)
  params = make_params(kp)
  packed = repack_params(params)        # one-time repack (off the hot path)

  state = init_state(enc_outputs)
  out = decoder_forward(x, state, packed)
  out = jax.block_until_ready(out)

  ref = reference(x, state, params)
  assert out.shape == (B, S, H)
  err = jnp.max(jnp.abs(out - ref))
  assert jnp.allclose(out, ref, rtol=1e-3, atol=1e-3), f"max err {err}"
  print("KERNEL_OK")
</pallas_src>

<mosaic_0001>
module attributes {stable_mosaic.version = 11 : i64} {
  func.func @decoder_block_kernel(%arg0: memref<16x32xf32, #tpu.memory_space<vmem>>, %arg1: memref<16x32xf32, #tpu.memory_space<vmem>>, %arg2: memref<32x96xf32, #tpu.memory_space<vmem>>, %arg3: memref<1x96xf32, #tpu.memory_space<vmem>>, %arg4: memref<32x32xf32, #tpu.memory_space<vmem>>, %arg5: memref<1x32xf32, #tpu.memory_space<vmem>>, %arg6: memref<32x32xf32, #tpu.memory_space<vmem>>, %arg7: memref<1x32xf32, #tpu.memory_space<vmem>>, %arg8: memref<32x64xf32, #tpu.memory_space<vmem>>, %arg9: memref<1x64xf32, #tpu.memory_space<vmem>>, %arg10: memref<32x32xf32, #tpu.memory_space<vmem>>, %arg11: memref<1x32xf32, #tpu.memory_space<vmem>>, %arg12: memref<32x64xf32, #tpu.memory_space<vmem>>, %arg13: memref<1x64xf32, #tpu.memory_space<vmem>>, %arg14: memref<64x32xf32, #tpu.memory_space<vmem>>, %arg15: memref<1x32xf32, #tpu.memory_space<vmem>>, %arg16: memref<3x1x32xf32, #tpu.memory_space<vmem>>, %arg17: memref<3x1x32xf32, #tpu.memory_space<vmem>>, %arg18: memref<16x16xf32, #tpu.memory_space<vmem>>, %arg19: memref<16x16xf32, #tpu.memory_space<vmem>>, %arg20: memref<16x32xf32, #tpu.memory_space<vmem>>) attributes {dimension_semantics = [], scalar_prefetch = 0 : i64, scratch_operands = 0 : i64, tpu.core_type = #tpu.core_type<tc>} {
    %c0 = arith.constant 0 : index
    %c0_0 = arith.constant 0 : index
    %0 = vector.load %arg0[%c0, %c0_0] : memref<16x32xf32, #tpu.memory_space<vmem>>, vector<16x32xf32>
    %c0_1 = arith.constant 0 : index
    %c0_2 = arith.constant 0 : index
    %1 = vector.load %arg1[%c0_1, %c0_2] : memref<16x32xf32, #tpu.memory_space<vmem>>, vector<16x32xf32>
    %c0_3 = arith.constant 0 : index
    %c0_4 = arith.constant 0 : index
    %2 = vector.load %arg18[%c0_3, %c0_4] : memref<16x16xf32, #tpu.memory_space<vmem>>, vector<16x16xf32>
    %c0_5 = arith.constant 0 : index
    %c0_6 = arith.constant 0 : index
    %3 = vector.load %arg19[%c0_5, %c0_6] : memref<16x16xf32, #tpu.memory_space<vmem>>, vector<16x16xf32>
    %c0_7 = arith.constant 0 : index
    %c0_8 = arith.constant 0 : index
    %4 = vector.load %arg2[%c0_7, %c0_8] : memref<32x96xf32, #tpu.memory_space<vmem>>, vector<32x96xf32>
    %cst = arith.constant dense<0.000000e+00> : vector<16x96xf32>
    %5 = tpu.matmul %0, %4, %cst {dimension_numbers = #tpu.dot_dimension_numbers<[1], [0], [0], [1], [0, 0, 1, 1], [], []>} : vector<16x32xf32>, vector<32x96xf32>, vector<16x96xf32> -> vector<16x96xf32>
    %c0_9 = arith.constant 0 : index
    %c0_10 = arith.constant 0 : index
    %6 = vector.load %arg3[%c0_9, %c0_10] : memref<1x96xf32, #tpu.memory_space<vmem>>, vector<1x96xf32>
    %7 = vector.broadcast %6 : vector<1x96xf32> to vector<16x96xf32>
    %8 = arith.addf %5, %7 : vector<16x96xf32>
    %9 = vector.extract_strided_slice %8 {offsets = [0, 0], sizes = [16, 8], strides = [1, 1]} : vector<16x96xf32> to vector<16x8xf32>
    %10 = vector.extract_strided_slice %8 {offsets = [0, 8], sizes = [16, 8], strides = [1, 1]} : vector<16x96xf32> to vector<16x8xf32>
    %11 = vector.extract_strided_slice %8 {offsets = [0, 16], sizes = [16, 8], strides = [1, 1]} : vector<16x96xf32> to vector<16x8xf32>
    %12 = vector.extract_strided_slice %8 {offsets = [0, 24], sizes = [16, 8], strides = [1, 1]} : vector<16x96xf32> to vector<16x8xf32>
    %13 = vector.shape_cast %9 : vector<16x8xf32> to vector<1x16x8xf32>
    %14 = vector.shape_cast %10 : vector<16x8xf32> to vector<1x16x8xf32>
    %15 = vector.shape_cast %11 : vector<16x8xf32> to vector<1x16x8xf32>
    %16 = vector.shape_cast %12 : vector<16x8xf32> to vector<1x16x8xf32>
    %17 = tpu.concatenate %13, %14, %15, %16 in 0 : vector<1x16x8xf32>, vector<1x16x8xf32>, vector<1x16x8xf32>, vector<1x16x8xf32> -> vector<4x16x8xf32>
    %18 = vector.extract_strided_slice %8 {offsets = [0, 32], sizes = [16, 8], strides = [1, 1]} : vector<16x96xf32> to vector<16x8xf32>
    %19 = vector.extract_strided_slice %8 {offsets = [0, 40], sizes = [16, 8], strides = [1, 1]} : vector<16x96xf32> to vector<16x8xf32>
    %20 = vector.extract_strided_slice %8 {offsets = [0, 48], sizes = [16, 8], strides = [1, 1]} : vector<16x96xf32> to vector<16x8xf32>
    %21 = vector.extract_strided_slice %8 {offsets = [0, 56], sizes = [16, 8], strides = [1, 1]} : vector<16x96xf32> to vector<16x8xf32>
    %22 = vector.shape_cast %18 : vector<16x8xf32> to vector<1x16x8xf32>
    %23 = vector.shape_cast %19 : vector<16x8xf32> to vector<1x16x8xf32>
    %24 = vector.shape_cast %20 : vector<16x8xf32> to vector<1x16x8xf32>
    %25 = vector.shape_cast %21 : vector<16x8xf32> to vector<1x16x8xf32>
    %26 = tpu.concatenate %22, %23, %24, %25 in 0 : vector<1x16x8xf32>, vector<1x16x8xf32>, vector<1x16x8xf32>, vector<1x16x8xf32> -> vector<4x16x8xf32>
    %27 = vector.extract_strided_slice %8 {offsets = [0, 64], sizes = [16, 8], strides = [1, 1]} : vector<16x96xf32> to vector<16x8xf32>
    %28 = vector.extract_strided_slice %8 {offsets = [0, 72], sizes = [16, 8], strides = [1, 1]} : vector<16x96xf32> to vector<16x8xf32>
    %29 = vector.extract_strided_slice %8 {offsets = [0, 80], sizes = [16, 8], strides = [1, 1]} : vector<16x96xf32> to vector<16x8xf32>
    %30 = vector.extract_strided_slice %8 {offsets = [0, 88], sizes = [16, 8], strides = [1, 1]} : vector<16x96xf32> to vector<16x8xf32>
    %31 = vector.shape_cast %27 : vector<16x8xf32> to vector<1x16x8xf32>
    %32 = vector.shape_cast %28 : vector<16x8xf32> to vector<1x16x8xf32>
    %33 = vector.shape_cast %29 : vector<16x8xf32> to vector<1x16x8xf32>
    %34 = vector.shape_cast %30 : vector<16x8xf32> to vector<1x16x8xf32>
    %35 = tpu.concatenate %31, %32, %33, %34 in 0 : vector<1x16x8xf32>, vector<1x16x8xf32>, vector<1x16x8xf32>, vector<1x16x8xf32> -> vector<4x16x8xf32>
    "tpu.trace_start"() <{level = 10 : i32, message = "hqd,hkd->hqk"}> : () -> ()
    %cst_11 = arith.constant dense<0.000000e+00> : vector<4x16x16xf32>
    %36 = tpu.matmul %17, %26, %cst_11 {dimension_numbers = #tpu.dot_dimension_numbers<[2], [2], [1], [1], [0, 0, 0, 1, 1, 1], [0], [0]>} : vector<4x16x8xf32>, vector<4x16x8xf32>, vector<4x16x16xf32> -> vector<4x16x16xf32>
    "tpu.trace_stop"() : () -> ()
    %37 = vector.shape_cast %2 : vector<16x16xf32> to vector<1x16x16xf32>
    %38 = vector.broadcast %37 : vector<1x16x16xf32> to vector<4x16x16xf32>
    %39 = arith.addf %36, %38 : vector<4x16x16xf32>
    %cst_12 = arith.constant dense<0xFF800000> : vector<4x16xf32>
    %40 = vector.multi_reduction <maximumf>, %39, %cst_12 [2] : vector<4x16x16xf32> to vector<4x16xf32>
    %41 = vector.shape_cast %40 : vector<4x16xf32> to vector<4x16x1xf32>
    %42 = vector.broadcast %41 : vector<4x16x1xf32> to vector<4x16x16xf32>
    %43 = arith.subf %39, %42 : vector<4x16x16xf32>
    %44 = math.exp %43 : vector<4x16x16xf32>
    %cst_13 = arith.constant dense<0.000000e+00> : vector<4x16xf32>
    %45 = vector.multi_reduction <add>, %44, %cst_13 [2] : vector<4x16x16xf32> to vector<4x16xf32>
    %46 = vector.shape_cast %45 : vector<4x16xf32> to vector<4x16x1xf32>
    %47 = vector.broadcast %46 : vector<4x16x1xf32> to vector<4x16x16xf32>
    %48 = arith.divf %44, %47 : vector<4x16x16xf32>
    "tpu.trace_start"() <{level = 10 : i32, message = "hqk,hkd->hqd"}> : () -> ()
    %cst_14 = arith.constant dense<0.000000e+00> : vector<4x16x8xf32>
    %49 = tpu.matmul %48, %35, %cst_14 {dimension_numbers = #tpu.dot_dimension_numbers<[2], [1], [1], [2], [0, 0, 0, 1, 1, 2], [0], [0]>} : vector<4x16x16xf32>, vector<4x16x8xf32>, vector<4x16x8xf32> -> vector<4x16x8xf32>
    "tpu.trace_stop"() : () -> ()
    %50 = vector.extract_strided_slice %49 {offsets = [0, 0, 0], sizes = [1, 16, 8], strides = [1, 1, 1]} : vector<4x16x8xf32> to vector<1x16x8xf32>
    %51 = vector.shape_cast %50 : vector<1x16x8xf32> to vector<16x8xf32>
    %52 = vector.extract_strided_slice %49 {offsets = [1, 0, 0], sizes = [1, 16, 8], strides = [1, 1, 1]} : vector<4x16x8xf32> to vector<1x16x8xf32>
    %53 = vector.shape_cast %52 : vector<1x16x8xf32> to vector<16x8xf32>
    %54 = vector.extract_strided_slice %49 {offsets = [2, 0, 0], sizes = [1, 16, 8], strides = [1, 1, 1]} : vector<4x16x8xf32> to vector<1x16x8xf32>
    %55 = vector.shape_cast %54 : vector<1x16x8xf32> to vector<16x8xf32>
    %56 = vector.extract_strided_slice %49 {offsets = [3, 0, 0], sizes = [1, 16, 8], strides = [1, 1, 1]} : vector<4x16x8xf32> to vector<1x16x8xf32>
    %57 = vector.shape_cast %56 : vector<1x16x8xf32> to vector<16x8xf32>
    %58 = tpu.concatenate %51, %53, %55, %57 in 1 : vector<16x8xf32>, vector<16x8xf32>, vector<16x8xf32>, vector<16x8xf32> -> vector<16x32xf32>
    %c0_15 = arith.constant 0 : index
    %c0_16 = arith.constant 0 : index
    %59 = vector.load %arg4[%c0_15, %c0_16] : memref<32x32xf32, #tpu.memory_space<vmem>>, vector<32x32xf32>
    %cst_17 = arith.constant dense<0.000000e+00> : vector<16x32xf32>
    %60 = tpu.matmul %58, %59, %cst_17 {dimension_numbers = #tpu.dot_dimension_numbers<[1], [0], [0], [1], [0, 0, 1, 1], [], []>} : vector<16x32xf32>, vector<32x32xf32>, vector<16x32xf32> -> vector<16x32xf32>
    %c0_18 = arith.constant 0 : index
    %c0_19 = arith.constant 0 : index
    %61 = vector.load %arg5[%c0_18, %c0_19] : memref<1x32xf32, #tpu.memory_space<vmem>>, vector<1x32xf32>
    %62 = vector.broadcast %61 : vector<1x32xf32> to vector<16x32xf32>
    %63 = arith.addf %60, %62 : vector<16x32xf32>
    %64 = arith.addf %0, %63 : vector<16x32xf32>
    %cst_20 = arith.constant dense<0.000000e+00> : vector<16xf32>
    %65 = vector.multi_reduction <add>, %64, %cst_20 [1] : vector<16x32xf32> to vector<16xf32>
    %66 = vector.shape_cast %65 : vector<16xf32> to vector<16x1xf32>
    %cst_21 = arith.constant 3.200000e+01 : f32
    %67 = vector.broadcast %cst_21 : f32 to vector<16x1xf32>
    %68 = arith.divf %66, %67 : vector<16x1xf32>
    %69 = arith.mulf %64, %64 : vector<16x32xf32>
    %cst_22 = arith.constant dense<0.000000e+00> : vector<16xf32>
    %70 = vector.multi_reduction <add>, %69, %cst_22 [1] : vector<16x32xf32> to vector<16xf32>
    %71 = vector.shape_cast %70 : vector<16xf32> to vector<16x1xf32>
    %cst_23 = arith.constant 3.200000e+01 : f32
    %72 = vector.broadcast %cst_23 : f32 to vector<16x1xf32>
    %73 = arith.divf %71, %72 : vector<16x1xf32>
    %74 = arith.mulf %68, %68 : vector<16x1xf32>
    %75 = arith.subf %73, %74 : vector<16x1xf32>
    %76 = vector.broadcast %68 : vector<16x1xf32> to vector<16x32xf32>
    %77 = arith.subf %64, %76 : vector<16x32xf32>
    %cst_24 = arith.constant 9.99999974E-6 : f32
    %78 = vector.broadcast %cst_24 : f32 to vector<16x1xf32>
    %79 = arith.addf %75, %78 : vector<16x1xf32>
    %80 = math.rsqrt %79 : vector<16x1xf32>
    %81 = vector.broadcast %80 : vector<16x1xf32> to vector<16x32xf32>
    %82 = arith.mulf %77, %81 : vector<16x32xf32>
    %c0_25 = arith.constant 0 : index
    %c0_26 = arith.constant 0 : index
    %c0_27 = arith.constant 0 : index
    %83 = vector.load %arg16[%c0_25, %c0_26, %c0_27] : memref<3x1x32xf32, #tpu.memory_space<vmem>>, vector<1x1x32xf32>
    %84 = vector.shape_cast %83 : vector<1x1x32xf32> to vector<1x32xf32>
    %85 = vector.broadcast %84 : vector<1x32xf32> to vector<16x32xf32>
    %86 = arith.mulf %82, %85 : vector<16x32xf32>
    %c0_28 = arith.constant 0 : index
    %c0_29 = arith.constant 0 : index
    %c0_30 = arith.constant 0 : index
    %87 = vector.load %arg17[%c0_28, %c0_29, %c0_30] : memref<3x1x32xf32, #tpu.memory_space<vmem>>, vector<1x1x32xf32>
    %88 = vector.shape_cast %87 : vector<1x1x32xf32> to vector<1x32xf32>
    %89 = vector.broadcast %88 : vector<1x32xf32> to vector<16x32xf32>
    %90 = arith.addf %86, %89 : vector<16x32xf32>
    %c0_31 = arith.constant 0 : index
    %c0_32 = arith.constant 0 : index
    %91 = vector.load %arg6[%c0_31, %c0_32] : memref<32x32xf32, #tpu.memory_space<vmem>>, vector<32x32xf32>
    %cst_33 = arith.constant dense<0.000000e+00> : vector<16x32xf32>
    %92 = tpu.matmul %90, %91, %cst_33 {dimension_numbers = #tpu.dot_dimension_numbers<[1], [0], [0], [1], [0, 0, 1, 1], [], []>} : vector<16x32xf32>, vector<32x32xf32>, vector<16x32xf32> -> vector<16x32xf32>
    %c0_34 = arith.constant 0 : index
    %c0_35 = arith.constant 0 : index
    %93 = vector.load %arg7[%c0_34, %c0_35] : memref<1x32xf32, #tpu.memory_space<vmem>>, vector<1x32xf32>
    %94 = vector.broadcast %93 : vector<1x32xf32> to vector<16x32xf32>
    %95 = arith.addf %92, %94 : vector<16x32xf32>
    %c0_36 = arith.constant 0 : index
    %c0_37 = arith.constant 0 : index
    %96 = vector.load %arg8[%c0_36, %c0_37] : memref<32x64xf32, #tpu.memory_space<vmem>>, vector<32x64xf32>
    %cst_38 = arith.constant dense<0.000000e+00> : vector<16x64xf32>
    %97 = tpu.matmul %1, %96, %cst_38 {dimension_numbers = #tpu.dot_dimension_numbers<[1], [0], [0], [1], [0, 0, 1, 1], [], []>} : vector<16x32xf32>, vector<32x64xf32>, vector<16x64xf32> -> vector<16x64xf32>
    %c0_39 = arith.constant 0 : index
    %c0_40 = arith.constant 0 : index
    %98 = vector.load %arg9[%c0_39, %c0_40] : memref<1x64xf32, #tpu.memory_space<vmem>>, vector<1x64xf32>
    %99 = vector.broadcast %98 : vector<1x64xf32> to vector<16x64xf32>
    %100 = arith.addf %97, %99 : vector<16x64xf32>
    %101 = vector.extract_strided_slice %95 {offsets = [0, 0], sizes = [16, 8], strides = [1, 1]} : vector<16x32xf32> to vector<16x8xf32>
    %102 = vector.extract_strided_slice %95 {offsets = [0, 8], sizes = [16, 8], strides = [1, 1]} : vector<16x32xf32> to vector<16x8xf32>
    %103 = vector.extract_strided_slice %95 {offsets = [0, 16], sizes = [16, 8], strides = [1, 1]} : vector<16x32xf32> to vector<16x8xf32>
    %104 = vector.extract_strided_slice %95 {offsets = [0, 24], sizes = [16, 8], strides = [1, 1]} : vector<16x32xf32> to vector<16x8xf32>
    %105 = vector.shape_cast %101 : vector<16x8xf32> to vector<1x16x8xf32>
    %106 = vector.shape_cast %102 : vector<16x8xf32> to vector<1x16x8xf32>
    %107 = vector.shape_cast %103 : vector<16x8xf32> to vector<1x16x8xf32>
    %108 = vector.shape_cast %104 : vector<16x8xf32> to vector<1x16x8xf32>
    %109 = tpu.concatenate %105, %106, %107, %108 in 0 : vector<1x16x8xf32>, vector<1x16x8xf32>, vector<1x16x8xf32>, vector<1x16x8xf32> -> vector<4x16x8xf32>
    %110 = vector.extract_strided_slice %100 {offsets = [0, 0], sizes = [16, 8], strides = [1, 1]} : vector<16x64xf32> to vector<16x8xf32>
    %111 = vector.extract_strided_slice %100 {offsets = [0, 8], sizes = [16, 8], strides = [1, 1]} : vector<16x64xf32> to vector<16x8xf32>
    %112 = vector.extract_strided_slice %100 {offsets = [0, 16], sizes = [16, 8], strides = [1, 1]} : vector<16x64xf32> to vector<16x8xf32>
    %113 = vector.extract_strided_slice %100 {offsets = [0, 24], sizes = [16, 8], strides = [1, 1]} : vector<16x64xf32> to vector<16x8xf32>
    %114 = vector.shape_cast %110 : vector<16x8xf32> to vector<1x16x8xf32>
    %115 = vector.shape_cast %111 : vector<16x8xf32> to vector<1x16x8xf32>
    %116 = vector.shape_cast %112 : vector<16x8xf32> to vector<1x16x8xf32>
    %117 = vector.shape_cast %113 : vector<16x8xf32> to vector<1x16x8xf32>
    %118 = tpu.concatenate %114, %115, %116, %117 in 0 : vector<1x16x8xf32>, vector<1x16x8xf32>, vector<1x16x8xf32>, vector<1x16x8xf32> -> vector<4x16x8xf32>
    %119 = vector.extract_strided_slice %100 {offsets = [0, 32], sizes = [16, 8], strides = [1, 1]} : vector<16x64xf32> to vector<16x8xf32>
    %120 = vector.extract_strided_slice %100 {offsets = [0, 40], sizes = [16, 8], strides = [1, 1]} : vector<16x64xf32> to vector<16x8xf32>
    %121 = vector.extract_strided_slice %100 {offsets = [0, 48], sizes = [16, 8], strides = [1, 1]} : vector<16x64xf32> to vector<16x8xf32>
    %122 = vector.extract_strided_slice %100 {offsets = [0, 56], sizes = [16, 8], strides = [1, 1]} : vector<16x64xf32> to vector<16x8xf32>
    %123 = vector.shape_cast %119 : vector<16x8xf32> to vector<1x16x8xf32>
    %124 = vector.shape_cast %120 : vector<16x8xf32> to vector<1x16x8xf32>
    %125 = vector.shape_cast %121 : vector<16x8xf32> to vector<1x16x8xf32>
    %126 = vector.shape_cast %122 : vector<16x8xf32> to vector<1x16x8xf32>
    %127 = tpu.concatenate %123, %124, %125, %126 in 0 : vector<1x16x8xf32>, vector<1x16x8xf32>, vector<1x16x8xf32>, vector<1x16x8xf32> -> vector<4x16x8xf32>
    "tpu.trace_start"() <{level = 10 : i32, message = "hqd,hkd->hqk"}> : () -> ()
    %cst_41 = arith.constant dense<0.000000e+00> : vector<4x16x16xf32>
    %128 = tpu.matmul %109, %118, %cst_41 {dimension_numbers = #tpu.dot_dimension_numbers<[2], [2], [1], [1], [0, 0, 0, 1, 1, 1], [0], [0]>} : vector<4x16x8xf32>, vector<4x16x8xf32>, vector<4x16x16xf32> -> vector<4x16x16xf32>
    "tpu.trace_stop"() : () -> ()
    %129 = vector.shape_cast %3 : vector<16x16xf32> to vector<1x16x16xf32>
    %130 = vector.broadcast %129 : vector<1x16x16xf32> to vector<4x16x16xf32>
    %131 = arith.addf %128, %130 : vector<4x16x16xf32>
    %cst_42 = arith.constant dense<0xFF800000> : vector<4x16xf32>
    %132 = vector.multi_reduction <maximumf>, %131, %cst_42 [2] : vector<4x16x16xf32> to vector<4x16xf32>
    %133 = vector.shape_cast %132 : vector<4x16xf32> to vector<4x16x1xf32>
    %134 = vector.broadcast %133 : vector<4x16x1xf32> to vector<4x16x16xf32>
    %135 = arith.subf %131, %134 : vector<4x16x16xf32>
    %136 = math.exp %135 : vector<4x16x16xf32>
    %cst_43 = arith.constant dense<0.000000e+00> : vector<4x16xf32>
    %137 = vector.multi_reduction <add>, %136, %cst_43 [2] : vector<4x16x16xf32> to vector<4x16xf32>
    %138 = vector.shape_cast %137 : vector<4x16xf32> to vector<4x16x1xf32>
    %139 = vector.broadcast %138 : vector<4x16x1xf32> to vector<4x16x16xf32>
    %140 = arith.divf %136, %139 : vector<4x16x16xf32>
    "tpu.trace_start"() <{level = 10 : i32, message = "hqk,hkd->hqd"}> : () -> ()
    %cst_44 = arith.constant dense<0.000000e+00> : vector<4x16x8xf32>
    %141 = tpu.matmul %140, %127, %cst_44 {dimension_numbers = #tpu.dot_dimension_numbers<[2], [1], [1], [2], [0, 0, 0, 1, 1, 2], [0], [0]>} : vector<4x16x16xf32>, vector<4x16x8xf32>, vector<4x16x8xf32> -> vector<4x16x8xf32>
    "tpu.trace_stop"() : () -> ()
    %142 = vector.extract_strided_slice %141 {offsets = [0, 0, 0], sizes = [1, 16, 8], strides = [1, 1, 1]} : vector<4x16x8xf32> to vector<1x16x8xf32>
    %143 = vector.shape_cast %142 : vector<1x16x8xf32> to vector<16x8xf32>
    %144 = vector.extract_strided_slice %141 {offsets = [1, 0, 0], sizes = [1, 16, 8], strides = [1, 1, 1]} : vector<4x16x8xf32> to vector<1x16x8xf32>
    %145 = vector.shape_cast %144 : vector<1x16x8xf32> to vector<16x8xf32>
    %146 = vector.extract_strided_slice %141 {offsets = [2, 0, 0], sizes = [1, 16, 8], strides = [1, 1, 1]} : vector<4x16x8xf32> to vector<1x16x8xf32>
    %147 = vector.shape_cast %146 : vector<1x16x8xf32> to vector<16x8xf32>
    %148 = vector.extract_strided_slice %141 {offsets = [3, 0, 0], sizes = [1, 16, 8], strides = [1, 1, 1]} : vector<4x16x8xf32> to vector<1x16x8xf32>
    %149 = vector.shape_cast %148 : vector<1x16x8xf32> to vector<16x8xf32>
    %150 = tpu.concatenate %143, %145, %147, %149 in 1 : vector<16x8xf32>, vector<16x8xf32>, vector<16x8xf32>, vector<16x8xf32> -> vector<16x32xf32>
    %c0_45 = arith.constant 0 : index
    %c0_46 = arith.constant 0 : index
    %151 = vector.load %arg10[%c0_45, %c0_46] : memref<32x32xf32, #tpu.memory_space<vmem>>, vector<32x32xf32>
    %cst_47 = arith.constant dense<0.000000e+00> : vector<16x32xf32>
    %152 = tpu.matmul %150, %151, %cst_47 {dimension_numbers = #tpu.dot_dimension_numbers<[1], [0], [0], [1], [0, 0, 1, 1], [], []>} : vector<16x32xf32>, vector<32x32xf32>, vector<16x32xf32> -> vector<16x32xf32>
    %c0_48 = arith.constant 0 : index
    %c0_49 = arith.constant 0 : index
    %153 = vector.load %arg11[%c0_48, %c0_49] : memref<1x32xf32, #tpu.memory_space<vmem>>, vector<1x32xf32>
    %154 = vector.broadcast %153 : vector<1x32xf32> to vector<16x32xf32>
    %155 = arith.addf %152, %154 : vector<16x32xf32>
    %156 = arith.addf %90, %155 : vector<16x32xf32>
    %cst_50 = arith.constant dense<0.000000e+00> : vector<16xf32>
    %157 = vector.multi_reduction <add>, %156, %cst_50 [1] : vector<16x32xf32> to vector<16xf32>
    %158 = vector.shape_cast %157 : vector<16xf32> to vector<16x1xf32>
    %cst_51 = arith.constant 3.200000e+01 : f32
    %159 = vector.broadcast %cst_51 : f32 to vector<16x1xf32>
    %160 = arith.divf %158, %159 : vector<16x1xf32>
    %161 = arith.mulf %156, %156 : vector<16x32xf32>
    %cst_52 = arith.constant dense<0.000000e+00> : vector<16xf32>
    %162 = vector.multi_reduction <add>, %161, %cst_52 [1] : vector<16x32xf32> to vector<16xf32>
    %163 = vector.shape_cast %162 : vector<16xf32> to vector<16x1xf32>
    %cst_53 = arith.constant 3.200000e+01 : f32
    %164 = vector.broadcast %cst_53 : f32 to vector<16x1xf32>
    %165 = arith.divf %163, %164 : vector<16x1xf32>
    %166 = arith.mulf %160, %160 : vector<16x1xf32>
    %167 = arith.subf %165, %166 : vector<16x1xf32>
    %168 = vector.broadcast %160 : vector<16x1xf32> to vector<16x32xf32>
    %169 = arith.subf %156, %168 : vector<16x32xf32>
    %cst_54 = arith.constant 9.99999974E-6 : f32
    %170 = vector.broadcast %cst_54 : f32 to vector<16x1xf32>
    %171 = arith.addf %167, %170 : vector<16x1xf32>
    %172 = math.rsqrt %171 : vector<16x1xf32>
    %173 = vector.broadcast %172 : vector<16x1xf32> to vector<16x32xf32>
    %174 = arith.mulf %169, %173 : vector<16x32xf32>
    %c1 = arith.constant 1 : index
    %c0_55 = arith.constant 0 : index
    %c0_56 = arith.constant 0 : index
    %175 = vector.load %arg16[%c1, %c0_55, %c0_56] : memref<3x1x32xf32, #tpu.memory_space<vmem>>, vector<1x1x32xf32>
    %176 = vector.shape_cast %175 : vector<1x1x32xf32> to vector<1x32xf32>
    %177 = vector.broadcast %176 : vector<1x32xf32> to vector<16x32xf32>
    %178 = arith.mulf %174, %177 : vector<16x32xf32>
    %c1_57 = arith.constant 1 : index
    %c0_58 = arith.constant 0 : index
    %c0_59 = arith.constant 0 : index
    %179 = vector.load %arg17[%c1_57, %c0_58, %c0_59] : memref<3x1x32xf32, #tpu.memory_space<vmem>>, vector<1x1x32xf32>
    %180 = vector.shape_cast %179 : vector<1x1x32xf32> to vector<1x32xf32>
    %181 = vector.broadcast %180 : vector<1x32xf32> to vector<16x32xf32>
    %182 = arith.addf %178, %181 : vector<16x32xf32>
    %c0_60 = arith.constant 0 : index
    %c0_61 = arith.constant 0 : index
    %183 = vector.load %arg12[%c0_60, %c0_61] : memref<32x64xf32, #tpu.memory_space<vmem>>, vector<32x64xf32>
    %cst_62 = arith.constant dense<0.000000e+00> : vector<16x64xf32>
    %184 = tpu.matmul %182, %183, %cst_62 {dimension_numbers = #tpu.dot_dimension_numbers<[1], [0], [0], [1], [0, 0, 1, 1], [], []>} : vector<16x32xf32>, vector<32x64xf32>, vector<16x64xf32> -> vector<16x64xf32>
    %c0_63 = arith.constant 0 : index
    %c0_64 = arith.constant 0 : index
    %185 = vector.load %arg13[%c0_63, %c0_64] : memref<1x64xf32, #tpu.memory_space<vmem>>, vector<1x64xf32>
    %186 = vector.broadcast %185 : vector<1x64xf32> to vector<16x64xf32>
    %187 = arith.addf %184, %186 : vector<16x64xf32>
    %cst_65 = arith.constant 0.000000e+00 : f32
    %188 = vector.broadcast %cst_65 : f32 to vector<16x64xf32>
    %189 = arith.maximumf %187, %188 : vector<16x64xf32>
    %c0_66 = arith.constant 0 : index
    %c0_67 = arith.constant 0 : index
    %190 = vector.load %arg14[%c0_66, %c0_67] : memref<64x32xf32, #tpu.memory_space<vmem>>, vector<64x32xf32>
    %cst_68 = arith.constant dense<0.000000e+00> : vector<16x32xf32>
    %191 = tpu.matmul %189, %190, %cst_68 {dimension_numbers = #tpu.dot_dimension_numbers<[1], [0], [0], [1], [0, 0, 1, 1], [], []>} : vector<16x64xf32>, vector<64x32xf32>, vector<16x32xf32> -> vector<16x32xf32>
    %c0_69 = arith.constant 0 : index
    %c0_70 = arith.constant 0 : index
    %192 = vector.load %arg15[%c0_69, %c0_70] : memref<1x32xf32, #tpu.memory_space<vmem>>, vector<1x32xf32>
    %193 = vector.broadcast %192 : vector<1x32xf32> to vector<16x32xf32>
    %194 = arith.addf %191, %193 : vector<16x32xf32>
    %195 = arith.addf %182, %194 : vector<16x32xf32>
    %cst_71 = arith.constant dense<0.000000e+00> : vector<16xf32>
    %196 = vector.multi_reduction <add>, %195, %cst_71 [1] : vector<16x32xf32> to vector<16xf32>
    %197 = vector.shape_cast %196 : vector<16xf32> to vector<16x1xf32>
    %cst_72 = arith.constant 3.200000e+01 : f32
    %198 = vector.broadcast %cst_72 : f32 to vector<16x1xf32>
    %199 = arith.divf %197, %198 : vector<16x1xf32>
    %200 = arith.mulf %195, %195 : vector<16x32xf32>
    %cst_73 = arith.constant dense<0.000000e+00> : vector<16xf32>
    %201 = vector.multi_reduction <add>, %200, %cst_73 [1] : vector<16x32xf32> to vector<16xf32>
    %202 = vector.shape_cast %201 : vector<16xf32> to vector<16x1xf32>
    %cst_74 = arith.constant 3.200000e+01 : f32
    %203 = vector.broadcast %cst_74 : f32 to vector<16x1xf32>
    %204 = arith.divf %202, %203 : vector<16x1xf32>
    %205 = arith.mulf %199, %199 : vector<16x1xf32>
    %206 = arith.subf %204, %205 : vector<16x1xf32>
    %207 = vector.broadcast %199 : vector<16x1xf32> to vector<16x32xf32>
    %208 = arith.subf %195, %207 : vector<16x32xf32>
    %cst_75 = arith.constant 9.99999974E-6 : f32
    %209 = vector.broadcast %cst_75 : f32 to vector<16x1xf32>
    %210 = arith.addf %206, %209 : vector<16x1xf32>
    %211 = math.rsqrt %210 : vector<16x1xf32>
    %212 = vector.broadcast %211 : vector<16x1xf32> to vector<16x32xf32>
    %213 = arith.mulf %208, %212 : vector<16x32xf32>
    %c2 = arith.constant 2 : index
    %c0_76 = arith.constant 0 : index
    %c0_77 = arith.constant 0 : index
    %214 = vector.load %arg16[%c2, %c0_76, %c0_77] : memref<3x1x32xf32, #tpu.memory_space<vmem>>, vector<1x1x32xf32>
    %215 = vector.shape_cast %214 : vector<1x1x32xf32> to vector<1x32xf32>
    %216 = vector.broadcast %215 : vector<1x32xf32> to vector<16x32xf32>
    %217 = arith.mulf %213, %216 : vector<16x32xf32>
    %c2_78 = arith.constant 2 : index
    %c0_79 = arith.constant 0 : index
    %c0_80 = arith.constant 0 : index
    %218 = vector.load %arg17[%c2_78, %c0_79, %c0_80] : memref<3x1x32xf32, #tpu.memory_space<vmem>>, vector<1x1x32xf32>
    %219 = vector.shape_cast %218 : vector<1x1x32xf32> to vector<1x32xf32>
    %220 = vector.broadcast %219 : vector<1x32xf32> to vector<16x32xf32>
    %221 = arith.addf %217, %220 : vector<16x32xf32>
    %c0_81 = arith.constant 0 : index
    %c0_82 = arith.constant 0 : index
    %222 = vector.load %arg20[%c0_81, %c0_82] : memref<16x32xf32, #tpu.memory_space<vmem>>, vector<16x32xf32>
    tpu.vector_store %arg20[%c0_81, %c0_82], %221 {strides = array<i32>} : memref<16x32xf32, #tpu.memory_space<vmem>>, vector<16x32xf32>,
    return
  }
}

</mosaic_0001>

<llo_original>
// kernel: decoder_forward.1
$region0: #{decoder_forward.1}
  #allocation0 [shape = 'u32[]', space=smem, size = 0x4, offset = 0x4, fixed_abs, tag = 'smem constant byte address 0x4 - core index']
  #allocation1 [shape = 'u32[72,128]{1,0:T(1,128)}', space=vmem, size = 0x9000, scoped, tag = 'internal scratch']
  %s0 = inlined_call_operand.hbm [shape: f32[16,32], index: 0, kind: input, shape index: {}]
  %s1 = inlined_call_operand.hbm [shape: f32[16,32], index: 1, kind: input, shape index: {}]
  %s2 = inlined_call_operand.vmem [shape: f32[32,96], index: 2, kind: input, shape index: {}]
  %s3 = inlined_call_operand.vmem [shape: f32[1,96], index: 3, kind: input, shape index: {}]
  %s4 = inlined_call_operand.vmem [shape: f32[32,32], index: 4, kind: input, shape index: {}]
  %s5 = inlined_call_operand.hbm [shape: f32[1,32], index: 5, kind: input, shape index: {}]
  %s6 = inlined_call_operand.vmem [shape: f32[32,32], index: 6, kind: input, shape index: {}]
  %s7 = inlined_call_operand.hbm [shape: f32[1,32], index: 7, kind: input, shape index: {}]
  %s8 = inlined_call_operand.hbm [shape: f32[32,64], index: 8, kind: input, shape index: {}]
  %s9 = inlined_call_operand.hbm [shape: f32[1,64], index: 9, kind: input, shape index: {}]
  %s10 = inlined_call_operand.hbm [shape: f32[32,32], index: 10, kind: input, shape index: {}]
  %s11 = inlined_call_operand.hbm [shape: f32[1,32], index: 11, kind: input, shape index: {}]
  %s12 = inlined_call_operand.hbm [shape: f32[32,64], index: 12, kind: input, shape index: {}]
  %s13 = inlined_call_operand.hbm [shape: f32[1,64], index: 13, kind: input, shape index: {}]
  %s14 = inlined_call_operand.vmem [shape: f32[64,32], index: 14, kind: input, shape index: {}]
  %s15 = inlined_call_operand.hbm [shape: f32[1,32], index: 15, kind: input, shape index: {}]
  %s16 = inlined_call_operand.hbm [shape: f32[3,1,32], index: 16, kind: input, shape index: {}]
  %s17 = inlined_call_operand.hbm [shape: f32[3,1,32], index: 17, kind: input, shape index: {}]
  %s18 = inlined_call_operand.vmem [shape: f32[16,16], index: 18, kind: input, shape index: {}]
  %s19 = inlined_call_operand.hbm [shape: f32[16,16], index: 19, kind: input, shape index: {}]
  %s20 = inlined_call_operand.hbm [shape: f32[16,32], index: 20, kind: output, shape index: {}]
  %s21 = sld [smem:[#allocation0]]
  $region146: #{decoder_forward.1} parent=0
    _
  %s23 = ssub.s32 1, %s21
  %s24 = scalar_select 0, %s23, %s21
  $region1: #{decoder_forward.1} parent=0
    #allocation2 [shape = 'u8[8192]{0}', space=vmem, size = 0x2000, scoped, tag = 'input window, operand 0, single buffered']
    #allocation3 [shape = 's32[1]{0}', space=sflag, size = 0x4, scoped, tag = 'scoped memory for decoder_forward.1']
    #allocation4 [shape = 's32[1]{0}', space=sflag, size = 0x4, scoped, tag = 'scoped memory for decoder_forward.1']
    #allocation5 [shape = 'u8[8192]{0}', space=vmem, size = 0x2000, scoped, tag = 'input window, operand 1, single buffered']
    #allocation6 [shape = 's32[1]{0}', space=sflag, size = 0x4, scoped, tag = 'scoped memory for decoder_forward.1']
    #allocation7 [shape = 'u8[512]{0}', space=vmem, size = 0x400, scoped, tag = 'input window, operand 5, single buffered']
    #allocation8 [shape = 'u8[512]{0}', space=vmem, size = 0x400, scoped, tag = 'input window, operand 7, single buffered']
    #allocation9 [shape = 's32[1]{0}', space=sflag, size = 0x4, scoped, tag = 'scoped memory for decoder_forward.1']
    #allocation10 [shape = 'u8[16384]{0}', space=vmem, size = 0x4000, scoped, tag = 'input window, operand 8, single buffered']
    #allocation11 [shape = 'u8[512]{0}', space=vmem, size = 0x400, scoped, tag = 'input window, operand 9, single buffered']
    #allocation12 [shape = 's32[1]{0}', space=sflag, size = 0x4, scoped, tag = 'scoped memory for decoder_forward.1']
    #allocation13 [shape = 'u8[16384]{0}', space=vmem, size = 0x4000, scoped, tag = 'input window, operand 10, single buffered']
    #allocation14 [shape = 'u8[512]{0}', space=vmem, size = 0x400, scoped, tag = 'input window, operand 11, single buffered']
    #allocation15 [shape = 's32[1]{0}', space=sflag, size = 0x4, scoped, tag = 'scoped memory for decoder_forward.1']
    #allocation16 [shape = 'u8[16384]{0}', space=vmem, size = 0x4000, scoped, tag = 'input window, operand 12, single buffered']
    #allocation17 [shape = 'u8[512]{0}', space=vmem, size = 0x400, scoped, tag = 'input window, operand 13, single buffered']
    #allocation18 [shape = 's32[1]{0}', space=sflag, size = 0x4, scoped, tag = 'scoped memory for decoder_forward.1']
    #allocation19 [shape = 'u8[512]{0}', space=vmem, size = 0x400, scoped, tag = 'input window, operand 15, single buffered']
    #allocation20 [shape = 'u8[1536]{0}', space=vmem, size = 0x800, scoped, tag = 'input window, operand 16, single buffered']
    #allocation21 [shape = 's32[1]{0}', space=sflag, size = 0x4, scoped, tag = 'scoped memory for decoder_forward.1']
    #allocation22 [shape = 'u8[1536]{0}', space=vmem, size = 0x800, scoped, tag = 'input window, operand 17, single buffered']
    #allocation23 [shape = 'u8[8192]{0}', space=vmem, size = 0x2000, scoped, tag = 'input window, operand 19, single buffered']
    #allocation24 [shape = 's32[1]{0}', space=sflag, size = 0x4, scoped, tag = 'scoped memory for decoder_forward.1']
    #allocation25 [shape = 'u8[8192]{0}', space=vmem, size = 0x2000, scoped, tag = 'output window, operand 0, single buffered']
    %25 = vsyncpa [#allocation3], 0
    %26 = vsyncpa [#allocation6], 0
    %27 = vsyncpa [#allocation9], 0
    %28 = vsyncpa [#allocation12], 0
    %29 = vsyncpa [#allocation15], 0
    %30 = vsyncpa [#allocation18], 0
    %31 = vsyncpa [#allocation21], 0
    %32 = vsyncpa [#allocation24], 0
    %33 = vsyncpa [#allocation4], 0
    // Predicated region
    $region2: #{decoder_forward.1} parent=1 // pred_check
      _
    $region3: #{decoder_forward.1} parent=1 // pred_check_branch
      %35 = sbr.rel (0) target = $region5
    $region4: #{decoder_forward.1} parent=1 // pred_region
      %37 = vsyncadd [#allocation3], 0
      %s38 = sshll.u32 %s0, 4
      %s39 = int_to_ptr.hbm [resolvable:$true] %s38
      %s40 = sshll.u32 [#allocation2], 4
      %s41 = int_to_ptr.vmem [resolvable:$true] %s40
      %46 = dma.hbm_to_vmem [thread:$0]  %s39, 256, %s41, [#allocation3], 128, 128, 8
    $region5: #{decoder_forward.1} parent=1 // pred_fallthru
      _
    // Predicated region
    $region6: #{decoder_forward.1} parent=1 // pred_check
      _
    $region7: #{decoder_forward.1} parent=1 // pred_check_branch
      %48 = sbr.rel (0) target = $region9
    $region8: #{decoder_forward.1} parent=1 // pred_region
      %50 = vsyncadd [#allocation6], 0
      %s51 = sshll.u32 %s1, 4
      %s52 = int_to_ptr.hbm [resolvable:$true] %s51
      %s53 = sshll.u32 [#allocation5], 4
      %s54 = int_to_ptr.vmem [resolvable:$true] %s53
      %59 = dma.hbm_to_vmem [thread:$0]  %s52, 256, %s54, [#allocation6], 128, 128, 8
    $region9: #{decoder_forward.1} parent=1 // pred_fallthru
      _
    // Predicated region
    $region10: #{decoder_forward.1} parent=1 // pred_check
      _
    $region11: #{decoder_forward.1} parent=1 // pred_check_branch
      %61 = sbr.rel (0) target = $region13
    $region12: #{decoder_forward.1} parent=1 // pred_region
      _
    $region13: #{decoder_forward.1} parent=1 // pred_fallthru
      _
    // Predicated region
    $region14: #{decoder_forward.1} parent=1 // pred_check
      _
    $region15: #{decoder_forward.1} parent=1 // pred_check_branch
      %63 = sbr.rel (0) target = $region17
    $region16: #{decoder_forward.1} parent=1 // pred_region
      _
    $region17: #{decoder_forward.1} parent=1 // pred_fallthru
      _
    // Predicated region
    $region18: #{decoder_forward.1} parent=1 // pred_check
      _
    $region19: #{decoder_forward.1} parent=1 // pred_check_branch
      %65 = sbr.rel (0) target = $region21
    $region20: #{decoder_forward.1} parent=1 // pred_region
      _
    $region21: #{decoder_forward.1} parent=1 // pred_fallthru
      _
    // Predicated region
    $region22: #{decoder_forward.1} parent=1 // pred_check
      _
    $region23: #{decoder_forward.1} parent=1 // pred_check_branch
      %67 = sbr.rel (0) target = $region25
    $region24: #{decoder_forward.1} parent=1 // pred_region
      %69 = vsyncadd [#allocation6], 0
      %s71 = sshll.u32 %s5, 4
      %s72 = int_to_ptr.hbm [resolvable:$true] %s71
      %s73 = sshll.u32 [#allocation7], 4
      %s74 = int_to_ptr.vmem [resolvable:$true] %s73
      %76 = dma.hbm_to_vmem [thread:$0]  %s72, 16, %s74, [#allocation6]
    $region25: #{decoder_forward.1} parent=1 // pred_fallthru
      _
    // Predicated region
    $region26: #{decoder_forward.1} parent=1 // pred_check
      _
    $region27: #{decoder_forward.1} parent=1 // pred_check_branch
      %78 = sbr.rel (0) target = $region29
    $region28: #{decoder_forward.1} parent=1 // pred_region
      _
    $region29: #{decoder_forward.1} parent=1 // pred_fallthru
      _
    // Predicated region
    $region30: #{decoder_forward.1} parent=1 // pred_check
      _
    $region31: #{decoder_forward.1} parent=1 // pred_check_branch
      %80 = sbr.rel (0) target = $region33
    $region32: #{decoder_forward.1} parent=1 // pred_region
      %82 = vsyncadd [#allocation9], 0
      %s84 = sshll.u32 %s7, 4
      %s85 = int_to_ptr.hbm [resolvable:$true] %s84
      %s86 = sshll.u32 [#allocation8], 4
      %s87 = int_to_ptr.vmem [resolvable:$true] %s86
      %89 = dma.hbm_to_vmem [thread:$0]  %s85, 16, %s87, [#allocation9]
    $region33: #{decoder_forward.1} parent=1 // pred_fallthru
      _
    // Predicated region
    $region34: #{decoder_forward.1} parent=1 // pred_check
      _
    $region35: #{decoder_forward.1} parent=1 // pred_check_branch
      %91 = sbr.rel (0) target = $region37
    $region36: #{decoder_forward.1} parent=1 // pred_region
      %93 = vsyncadd [#allocation9], 0
      %s94 = sshll.u32 %s8, 4
      %s95 = int_to_ptr.hbm [resolvable:$true] %s94
      %s96 = sshll.u32 [#allocation10], 4
      %s97 = int_to_ptr.vmem [resolvable:$true] %s96
      %102 = dma.hbm_to_vmem [thread:$0]  %s95, 512, %s97, [#allocation9], 128, 128, 8
    $region37: #{decoder_forward.1} parent=1 // pred_fallthru
      _
    // Predicated region
    $region38: #{decoder_forward.1} parent=1 // pred_check
      _
    $region39: #{decoder_forward.1} parent=1 // pred_check_branch
      %104 = sbr.rel (0) target = $region41
    $region40: #{decoder_forward.1} parent=1 // pred_region
      %106 = vsyncadd [#allocation12], 0
      %s108 = sshll.u32 %s9, 4
      %s109 = int_to_ptr.hbm [resolvable:$true] %s108
      %s110 = sshll.u32 [#allocation11], 4
      %s111 = int_to_ptr.vmem [resolvable:$true] %s110
      %113 = dma.hbm_to_vmem [thread:$0]  %s109, 16, %s111, [#allocation12]
    $region41: #{decoder_forward.1} parent=1 // pred_fallthru
      _
    // Predicated region
    $region42: #{decoder_forward.1} parent=1 // pred_check
      _
    $region43: #{decoder_forward.1} parent=1 // pred_check_branch
      %115 = sbr.rel (0) target = $region45
    $region44: #{decoder_forward.1} parent=1 // pred_region
      %117 = vsyncadd [#allocation12], 0
      %s118 = sshll.u32 %s10, 4
      %s119 = int_to_ptr.hbm [resolvable:$true] %s118
      %s120 = sshll.u32 [#allocation13], 4
      %s121 = int_to_ptr.vmem [resolvable:$true] %s120
      %126 = dma.hbm_to_vmem [thread:$0]  %s119, 512, %s121, [#allocation12], 128, 128, 8
    $region45: #{decoder_forward.1} parent=1 // pred_fallthru
      _
    // Predicated region
    $region46: #{decoder_forward.1} parent=1 // pred_check
      _
    $region47: #{decoder_forward.1} parent=1 // pred_check_branch
      %128 = sbr.rel (0) target = $region49
    $region48: #{decoder_forward.1} parent=1 // pred_region
      %130 = vsyncadd [#allocation15], 0
      %s132 = sshll.u32 %s11, 4
      %s133 = int_to_ptr.hbm [resolvable:$true] %s132
      %s134 = sshll.u32 [#allocation14], 4
      %s135 = int_to_ptr.vmem [resolvable:$true] %s134
      %137 = dma.hbm_to_vmem [thread:$0]  %s133, 16, %s135, [#allocation15]
    $region49: #{decoder_forward.1} parent=1 // pred_fallthru
      _
    // Predicated region
    $region50: #{decoder_forward.1} parent=1 // pred_check
      _
    $region51: #{decoder_forward.1} parent=1 // pred_check_branch
      %139 = sbr.rel (0) target = $region53
    $region52: #{decoder_forward.1} parent=1 // pred_region
      %141 = vsyncadd [#allocation15], 0
      %s142 = sshll.u32 %s12, 4
      %s143 = int_to_ptr.hbm [resolvable:$true] %s142
      %s144 = sshll.u32 [#allocation16], 4
      %s145 = int_to_ptr.vmem [resolvable:$true] %s144
      %150 = dma.hbm_to_vmem [thread:$0]  %s143, 512, %s145, [#allocation15], 128, 128, 8
    $region53: #{decoder_forward.1} parent=1 // pred_fallthru
      _
    // Predicated region
    $region54: #{decoder_forward.1} parent=1 // pred_check
      _
    $region55: #{decoder_forward.1} parent=1 // pred_check_branch
      %152 = sbr.rel (0) target = $region57
    $region56: #{decoder_forward.1} parent=1 // pred_region
      %154 = vsyncadd [#allocation18], 0
      %s156 = sshll.u32 %s13, 4
      %s157 = int_to_ptr.hbm [resolvable:$true] %s156
      %s158 = sshll.u32 [#allocation17], 4
      %s159 = int_to_ptr.vmem [resolvable:$true] %s158
      %161 = dma.hbm_to_vmem [thread:$0]  %s157, 16, %s159, [#allocation18]
    $region57: #{decoder_forward.1} parent=1 // pred_fallthru
      _
    // Predicated region
    $region58: #{decoder_forward.1} parent=1 // pred_check
      _
    $region59: #{decoder_forward.1} parent=1 // pred_check_branch
      %163 = sbr.rel (0) target = $region61
    $region60: #{decoder_forward.1} parent=1 // pred_region
      _
    $region61: #{decoder_forward.1} parent=1 // pred_fallthru
      _
    // Predicated region
    $region62: #{decoder_forward.1} parent=1 // pred_check
      _
    $region63: #{decoder_forward.1} parent=1 // pred_check_branch
      %165 = sbr.rel (0) target = $region65
    $region64: #{decoder_forward.1} parent=1 // pred_region
      %167 = vsyncadd [#allocation18], 0
      %s169 = sshll.u32 %s15, 4
      %s170 = int_to_ptr.hbm [resolvable:$true] %s169
      %s171 = sshll.u32 [#allocation19], 4
      %s172 = int_to_ptr.vmem [resolvable:$true] %s171
      %174 = dma.hbm_to_vmem [thread:$0]  %s170, 16, %s172, [#allocation18]
    $region65: #{decoder_forward.1} parent=1 // pred_fallthru
      _
    // Predicated region
    $region66: #{decoder_forward.1} parent=1 // pred_check
      _
    $region67: #{decoder_forward.1} parent=1 // pred_check_branch
      %176 = sbr.rel (0) target = $region69
    $region68: #{decoder_forward.1} parent=1 // pred_region
      %178 = vsyncadd [#allocation21], 0
      %s179 = sshll.u32 %s16, 4
      %s180 = int_to_ptr.hbm [resolvable:$true] %s179
      %s181 = sshll.u32 [#allocation20], 4
      %s182 = int_to_ptr.vmem [resolvable:$true] %s181
      %187 = dma.hbm_to_vmem [thread:$0]  %s180, 48, %s182, [#allocation21], 16, 16, 1
    $region69: #{decoder_forward.1} parent=1 // pred_fallthru
      _
    // Predicated region
    $region70: #{decoder_forward.1} parent=1 // pred_check
      _
    $region71: #{decoder_forward.1} parent=1 // pred_check_branch
      %189 = sbr.rel (0) target = $region73
    $region72: #{decoder_forward.1} parent=1 // pred_region
      %191 = vsyncadd [#allocation21], 0
      %s192 = sshll.u32 %s17, 4
      %s193 = int_to_ptr.hbm [resolvable:$true] %s192
      %s194 = sshll.u32 [#allocation22], 4
      %s195 = int_to_ptr.vmem [resolvable:$true] %s194
      %200 = dma.hbm_to_vmem [thread:$0]  %s193, 48, %s195, [#allocation21], 16, 16, 1
    $region73: #{decoder_forward.1} parent=1 // pred_fallthru
      _
    // Predicated region
    $region74: #{decoder_forward.1} parent=1 // pred_check
      _
    $region75: #{decoder_forward.1} parent=1 // pred_check_branch
      %202 = sbr.rel (0) target = $region77
    $region76: #{decoder_forward.1} parent=1 // pred_region
      _
    $region77: #{decoder_forward.1} parent=1 // pred_fallthru
      _
    // Predicated region
    $region78: #{decoder_forward.1} parent=1 // pred_check
      _
    $region79: #{decoder_forward.1} parent=1 // pred_check_branch
      %204 = sbr.rel (0) target = $region81
    $region80: #{decoder_forward.1} parent=1 // pred_region
      %206 = vsyncadd [#allocation24], 0
      %s207 = sshll.u32 %s19, 4
      %s208 = int_to_ptr.hbm [resolvable:$true] %s207
      %s209 = sshll.u32 [#allocation23], 4
      %s210 = int_to_ptr.vmem [resolvable:$true] %s209
      %215 = dma.hbm_to_vmem [thread:$0]  %s208, 256, %s210, [#allocation24], 128, 128, 8
    $region81: #{decoder_forward.1} parent=1 // pred_fallthru
      _
    // Predicated region
    $region82: #{decoder_forward.1} parent=1 // pred_check
      _
    $region83: #{decoder_forward.1} parent=1 // pred_check_branch
      %217 = sbr.rel (0) target = $region85
    $region84: #{decoder_forward.1} parent=1 // pred_region
      %219 = dma.done [#allocation3], 256
    $region85: #{decoder_forward.1} parent=1 // pred_fallthru
      _
    // Predicated region
    $region86: #{decoder_forward.1} parent=1 // pred_check
      _
    $region87: #{decoder_forward.1} parent=1 // pred_check_branch
      %221 = sbr.rel (0) target = $region89
    $region88: #{decoder_forward.1} parent=1 // pred_region
      %223 = dma.done [#allocation6], 256
    $region89: #{decoder_forward.1} parent=1 // pred_fallthru
      _
    // Predicated region
    $region90: #{decoder_forward.1} parent=1 // pred_check
      _
    $region91: #{decoder_forward.1} parent=1 // pred_check_branch
      %225 = sbr.rel (0) target = $region93
    $region92: #{decoder_forward.1} parent=1 // pred_region
      %227 = dma.done [#allocation6], 16
    $region93: #{decoder_forward.1} parent=1 // pred_fallthru
      _
    // Predicated region
    $region94: #{decoder_forward.1} parent=1 // pred_check
      _
    $region95: #{decoder_forward.1} parent=1 // pred_check_branch
      %229 = sbr.rel (0) target = $region97
    $region96: #{decoder_forward.1} parent=1 // pred_region
      %231 = dma.done [#allocation9], 16
    $region97: #{decoder_forward.1} parent=1 // pred_fallthru
      _
    // Predicated region
    $region98: #{decoder_forward.1} parent=1 // pred_check
      _
    $region99: #{decoder_forward.1} parent=1 // pred_check_branch
      %233 = sbr.rel (0) target = $region101
    $region100: #{decoder_forward.1} parent=1 // pred_region
      %235 = dma.done [#allocation9], 512
    $region101: #{decoder_forward.1} parent=1 // pred_fallthru
      _
    // Predicated region
    $region102: #{decoder_forward.1} parent=1 // pred_check
      _
    $region103: #{decoder_forward.1} parent=1 // pred_check_branch
      %237 = sbr.rel (0) target = $region105
    $region104: #{decoder_forward.1} parent=1 // pred_region
      %239 = dma.done [#allocation12], 16
    $region105: #{decoder_forward.1} parent=1 // pred_fallthru
      _
    // Predicated region
    $region106: #{decoder_forward.1} parent=1 // pred_check
      _
    $region107: #{decoder_forward.1} parent=1 // pred_check_branch
      %241 = sbr.rel (0) target = $region109
    $region108: #{decoder_forward.1} parent=1 // pred_region
      %243 = dma.done [#allocation12], 512
    $region109: #{decoder_forward.1} parent=1 // pred_fallthru
      _
    // Predicated region
    $region110: #{decoder_forward.1} parent=1 // pred_check
      _
    $region111: #{decoder_forward.1} parent=1 // pred_check_branch
      %245 = sbr.rel (0) target = $region113
    $region112: #{decoder_forward.1} parent=1 // pred_region
      %247 = dma.done [#allocation15], 16
    $region113: #{decoder_forward.1} parent=1 // pred_fallthru
      _
    // Predicated region
    $region114: #{decoder_forward.1} parent=1 // pred_check
      _
    $region115: #{decoder_forward.1} parent=1 // pred_check_branch
      %249 = sbr.rel (0) target = $region117
    $region116: #{decoder_forward.1} parent=1 // pred_region
      %251 = dma.done [#allocation15], 512
    $region117: #{decoder_forward.1} parent=1 // pred_fallthru
      _
    // Predicated region
    $region118: #{decoder_forward.1} parent=1 // pred_check
      _
    $region119: #{decoder_forward.1} parent=1 // pred_check_branch
      %253 = sbr.rel (0) target = $region121
    $region120: #{decoder_forward.1} parent=1 // pred_region
      %255 = dma.done [#allocation18], 16
    $region121: #{decoder_forward.1} parent=1 // pred_fallthru
      _
    // Predicated region
    $region122: #{decoder_forward.1} parent=1 // pred_check
      _
    $region123: #{decoder_forward.1} parent=1 // pred_check_branch
      %257 = sbr.rel (0) target = $region125
    $region124: #{decoder_forward.1} parent=1 // pred_region
      %259 = dma.done [#allocation18], 16
    $region125: #{decoder_forward.1} parent=1 // pred_fallthru
      _
    // Predicated region
    $region126: #{decoder_forward.1} parent=1 // pred_check
      _
    $region127: #{decoder_forward.1} parent=1 // pred_check_branch
      %261 = sbr.rel (0) target = $region129
    $region128: #{decoder_forward.1} parent=1 // pred_region
      %263 = dma.done [#allocation21], 48
    $region129: #{decoder_forward.1} parent=1 // pred_fallthru
      _
    // Predicated region
    $region130: #{decoder_forward.1} parent=1 // pred_check
      _
    $region131: #{decoder_forward.1} parent=1 // pred_check_branch
      %265 = sbr.rel (0) target = $region133
    $region132: #{decoder_forward.1} parent=1 // pred_region
      %267 = dma.done [#allocation21], 48
    $region133: #{decoder_forward.1} parent=1 // pred_fallthru
      _
    // Predicated region
    $region134: #{decoder_forward.1} parent=1 // pred_check
      _
    $region135: #{decoder_forward.1} parent=1 // pred_check_branch
      %269 = sbr.rel (0) target = $region137
    $region136: #{decoder_forward.1} parent=1 // pred_region
      %271 = dma.done [#allocation24], 256
    $region137: #{decoder_forward.1} parent=1 // pred_fallthru
      _
    %v272 = vld [vmem:[#allocation2] sm:$0xff]
    %v273 = vld [vmem:[#allocation2 + $0x8] sm:$0xff]
    %v274 = vld [vmem:[#allocation5] sm:$0xff]
    %v275 = vld [vmem:[#allocation5 + $0x8] sm:$0xff]
    %v276 = vld [vmem:[%s18] sm:$0xff]
    %v277 = vld [vmem:[%s18 + $0x8] sm:$0xff]
    %v278 = vld [vmem:[#allocation23] sm:$0xff]
    %v279 = vld [vmem:[#allocation23 + $0x8] sm:$0xff]
    %v280 = vld [vmem:[%s2] sm:$0xff]
    %v281 = vld [vmem:[%s2 + $0x8] sm:$0xff]
    %v282 = vld [vmem:[%s2 + $0x10] sm:$0xff]
    %v283 = vld [vmem:[%s2 + $0x18] sm:$0xff]
    %v284 = vld [vmem:[%s3] sm:$0x1]
    %v286 = vperm.slane %v284, 0
    %vm288 = vcmask 261120
    %v290 = vsel %vm288, %v272, 0
    %v293 = vsel %vm288, %v273, 0
    %295 = vmatpush.msra.mxu0 0.0
    %296 = vmatpush.msra.mxu0 0.0
    %297 = vmatpush.msra.mxu0 0.0
    %298 = vmatpush.msra.mxu0 0.0
    %299 = vmatpush.msra.mxu0 0.0
    %300 = vmatpush.msra.mxu0 0.0
    %301 = vmatpush.msra.mxu0 0.0
    %302 = vmatpush.msra.mxu0 0.0
    %303 = vmatpush.msra.mxu0 0.0
    %304 = vmatpush.msra.mxu0 0.0
    %305 = vmatpush.msra.mxu0 0.0
    %306 = vmatpush.msra.mxu0 0.0
    %307 = vmatpush.msra.mxu0 %v283
    %308 = vmatpush.msra.mxu0 %v282
    %309 = vmatpush.msra.mxu0 %v281
    %310 = vmatpush.msra.mxu0 %v280
    %311 = vmatmul.f32.gmra.mxu0 %v290
    %v312 = vpop.f32.mrf.mxu0
    %v313 = vadd.f32 %v286, %v312
    %314 = vmatmul.f32.gmra.mxu0 %v293
    %v315 = vpop.f32.mrf.mxu0
    %v316 = vadd.f32 %v286, %v315
    %317 = vdwg.mxu0
    %320 = vrot.lane.b32.xlu0 %v313, 120
    %v321 = vpop.permute.xlu0 %320
    %322 = vrot.lane.b32.xlu0 %v316, 120
    %v323 = vpop.permute.xlu0 %322
    %324 = vrot.lane.b32.xlu0 %v313, 112
    %v325 = vpop.permute.xlu0 %324
    %326 = vrot.lane.b32.xlu0 %v316, 112
    %v327 = vpop.permute.xlu0 %326
    %328 = vrot.lane.b32.xlu0 %v313, 104
    %v329 = vpop.permute.xlu0 %328
    %330 = vrot.lane.b32.xlu0 %v316, 104
    %v331 = vpop.permute.xlu0 %330
    %332 = vrot.lane.b32.xlu0 %v313, 96
    %v333 = vpop.permute.xlu0 %332
    %334 = vrot.lane.b32.xlu0 %v316, 96
    %v335 = vpop.permute.xlu0 %334
    %vm336 = vcmask 64512
    %v337 = vsel %vm336, %v313, 0
    %v339 = vsel %vm336, %v316, 0
    %v341 = vsel %vm336, %v333, 0
    %v343 = vsel %vm336, %v335, 0
    %345 = vmatpush.xpose.msra.mxu0 0.0
    %346 = vmatpush.xpose.msra.mxu0 0.0
    %347 = vmatpush.xpose.msra.mxu0 0.0
    %348 = vmatpush.xpose.msra.mxu0 0.0
    %349 = vmatpush.xpose.msra.mxu0 0.0
    %350 = vmatpush.xpose.msra.mxu0 0.0
    %351 = vmatpush.xpose.msra.mxu0 0.0
    %352 = vmatpush.xpose.msra.mxu0 0.0
    %353 = vmatpush.xpose.msra.mxu0 0.0
    %354 = vmatpush.xpose.msra.mxu0 0.0
    %355 = vmatpush.xpose.msra.mxu0 0.0
    %356 = vmatpush.xpose.msra.mxu0 0.0
    %357 = vmatpush.xpose.msra.mxu0 0.0
    %358 = vmatpush.xpose.msra.mxu0 0.0
    %359 = vmatpush.xpose.msra.mxu0 %v343
    %360 = vmatpush.xpose.msra.mxu0 %v341
    %361 = vmatmul.f32.gmra.mxu0 %v337
    %v362 = vpop.f32.mrf.mxu0
    %v363 = vadd.f32 %v276, %v362
    %364 = vmatmul.f32.gmra.mxu0 %v339
    %v365 = vpop.f32.mrf.mxu0
    %v366 = vadd.f32 %v277, %v365
    %367 = vdwg.mxu0
    %368 = vrot.lane.b32.xlu0 %v321, 96
    %v369 = vpop.permute.xlu0 %368
    %370 = vrot.lane.b32.xlu0 %v323, 96
    %v371 = vpop.permute.xlu0 %370
    %v372 = vsel %vm336, %v321, 0
    %v374 = vsel %vm336, %v323, 0
    %v376 = vsel %vm336, %v369, 0
    %v378 = vsel %vm336, %v371, 0
    %380 = vmatpush.xpose.msra.mxu0 0.0
    %381 = vmatpush.xpose.msra.mxu0 0.0
    %382 = vmatpush.xpose.msra.mxu0 0.0
    %383 = vmatpush.xpose.msra.mxu0 0.0
    %384 = vmatpush.xpose.msra.mxu0 0.0
    %385 = vmatpush.xpose.msra.mxu0 0.0
    %386 = vmatpush.xpose.msra.mxu0 0.0
    %387 = vmatpush.xpose.msra.mxu0 0.0
    %388 = vmatpush.xpose.msra.mxu0 0.0
    %389 = vmatpush.xpose.msra.mxu0 0.0
    %390 = vmatpush.xpose.msra.mxu0 0.0
    %391 = vmatpush.xpose.msra.mxu0 0.0
    %392 = vmatpush.xpose.msra.mxu0 0.0
    %393 = vmatpush.xpose.msra.mxu0 0.0
    %394 = vmatpush.xpose.msra.mxu0 %v378
    %395 = vmatpush.xpose.msra.mxu0 %v376
    %396 = vmatmul.f32.gmra.mxu0 %v372
    %v397 = vpop.f32.mrf.mxu0
    %v398 = vadd.f32 %v276, %v397
    %399 = vmatmul.f32.gmra.mxu0 %v374
    %v400 = vpop.f32.mrf.mxu0
    %v401 = vadd.f32 %v277, %v400
    %402 = vdwg.mxu0
    %403 = vrot.lane.b32.xlu0 %v325, 96
    %v404 = vpop.permute.xlu0 %403
    %405 = vrot.lane.b32.xlu0 %v327, 96
    %v406 = vpop.permute.xlu0 %405
    %v407 = vsel %vm336, %v325, 0
    %v409 = vsel %vm336, %v327, 0
    %v411 = vsel %vm336, %v404, 0
    %v413 = vsel %vm336, %v406, 0
    %415 = vmatpush.xpose.msra.mxu0 0.0
    %416 = vmatpush.xpose.msra.mxu0 0.0
    %417 = vmatpush.xpose.msra.mxu0 0.0
    %418 = vmatpush.xpose.msra.mxu0 0.0
    %419 = vmatpush.xpose.msra.mxu0 0.0
    %420 = vmatpush.xpose.msra.mxu0 0.0
    %421 = vmatpush.xpose.msra.mxu0 0.0
    %422 = vmatpush.xpose.msra.mxu0 0.0
    %423 = vmatpush.xpose.msra.mxu0 0.0
    %424 = vmatpush.xpose.msra.mxu0 0.0
    %425 = vmatpush.xpose.msra.mxu0 0.0
    %426 = vmatpush.xpose.msra.mxu0 0.0
    %427 = vmatpush.xpose.msra.mxu0 0.0
    %428 = vmatpush.xpose.msra.mxu0 0.0
    %429 = vmatpush.xpose.msra.mxu0 %v413
    %430 = vmatpush.xpose.msra.mxu0 %v411
    %431 = vmatmul.f32.gmra.mxu0 %v407
    %v432 = vpop.f32.mrf.mxu0
    %v433 = vadd.f32 %v276, %v432
    %434 = vmatmul.f32.gmra.mxu0 %v409
    %v435 = vpop.f32.mrf.mxu0
    %v436 = vadd.f32 %v277, %v435
    %437 = vdwg.mxu0
    %438 = vrot.lane.b32.xlu0 %v329, 96
    %v439 = vpop.permute.xlu0 %438
    %440 = vrot.lane.b32.xlu0 %v331, 96
    %v441 = vpop.permute.xlu0 %440
    %v442 = vsel %vm336, %v329, 0
    %v444 = vsel %vm336, %v331, 0
    %v446 = vsel %vm336, %v439, 0
    %v448 = vsel %vm336, %v441, 0
    %450 = vmatpush.xpose.msra.mxu0 0.0
    %451 = vmatpush.xpose.msra.mxu0 0.0
    %452 = vmatpush.xpose.msra.mxu0 0.0
    %453 = vmatpush.xpose.msra.mxu0 0.0
    %454 = vmatpush.xpose.msra.mxu0 0.0
    %455 = vmatpush.xpose.msra.mxu0 0.0
    %456 = vmatpush.xpose.msra.mxu0 0.0
    %457 = vmatpush.xpose.msra.mxu0 0.0
    %458 = vmatpush.xpose.msra.mxu0 0.0
    %459 = vmatpush.xpose.msra.mxu0 0.0
    %460 = vmatpush.xpose.msra.mxu0 0.0
    %461 = vmatpush.xpose.msra.mxu0 0.0
    %462 = vmatpush.xpose.msra.mxu0 0.0
    %463 = vmatpush.xpose.msra.mxu0 0.0
    %464 = vmatpush.xpose.msra.mxu0 %v448
    %465 = vmatpush.xpose.msra.mxu0 %v446
    %466 = vmatmul.f32.gmra.mxu0 %v442
    %v467 = vpop.f32.mrf.mxu0
    %v468 = vadd.f32 %v276, %v467
    %469 = vmatmul.f32.gmra.mxu0 %v444
    %v470 = vpop.f32.mrf.mxu0
    %v471 = vadd.f32 %v277, %v470
    %472 = vdwg.mxu0
    %vm473 = vcmask 130048
    %v474 = vsel %vm473, %v363, -inf
    %475 = vmax.xlane.f32.xlu0 %v474
    %v476 = vpop.xlane.xlu0 %475
    %v477 = vsel %vm473, %v366, -inf
    %478 = vmax.xlane.f32.xlu0 %v477
    %v479 = vpop.xlane.xlu0 %478
    %v480 = vsel %vm473, %v398, -inf
    %481 = vmax.xlane.f32.xlu0 %v480
    %v482 = vpop.xlane.xlu0 %481
    %v483 = vsel %vm473, %v401, -inf
    %484 = vmax.xlane.f32.xlu0 %v483
    %v485 = vpop.xlane.xlu0 %484
    %v486 = vsel %vm473, %v433, -inf
    %487 = vmax.xlane.f32.xlu0 %v486
    %v488 = vpop.xlane.xlu0 %487
    %v489 = vsel %vm473, %v436, -inf
    %490 = vmax.xlane.f32.xlu0 %v489
    %v491 = vpop.xlane.xlu0 %490
    %v492 = vsel %vm473, %v468, -inf
    %493 = vmax.xlane.f32.xlu0 %v492
    %v494 = vpop.xlane.xlu0 %493
    %v495 = vsel %vm473, %v471, -inf
    %496 = vmax.xlane.f32.xlu0 %v495
    %v497 = vpop.xlane.xlu0 %496
    %v498 = vsub.f32 %v363, %v476
    %v499 = vsub.f32 %v366, %v479
    %v500 = vsub.f32 %v398, %v482
    %v501 = vsub.f32 %v401, %v485
    %v502 = vsub.f32 %v433, %v488
    %v503 = vsub.f32 %v436, %v491
    %v504 = vsub.f32 %v468, %v494
    %v505 = vsub.f32 %v471, %v497
    %v506 = vmul.f32 %v498, 1.442695
    %v507 = vpow.pop %v506
    %v508 = vmul.f32 %v499, 1.442695
    %v509 = vpow.pop %v508
    %v510 = vmul.f32 %v500, 1.442695
    %v511 = vpow.pop %v510
    %v512 = vmul.f32 %v501, 1.442695
    %v513 = vpow.pop %v512
    %v514 = vmul.f32 %v502, 1.442695
    %v515 = vpow.pop %v514
    %v516 = vmul.f32 %v503, 1.442695
    %v517 = vpow.pop %v516
    %v518 = vmul.f32 %v504, 1.442695
    %v519 = vpow.pop %v518
    %v520 = vmul.f32 %v505, 1.442695
    %v521 = vpow.pop %v520
    %v522 = vsel %vm473, %v507, 0.0
    %523 = vadd.xlane.f32.xlu0 %v522
    %v524 = vpop.xlane.xlu0 %523
    %v525 = vsel %vm473, %v509, 0.0
    %526 = vadd.xlane.f32.xlu0 %v525
    %v527 = vpop.xlane.xlu0 %526
    %v528 = vsel %vm473, %v511, 0.0
    %529 = vadd.xlane.f32.xlu0 %v528
    %v530 = vpop.xlane.xlu0 %529
    %v531 = vsel %vm473, %v513, 0.0
    %532 = vadd.xlane.f32.xlu0 %v531
    %v533 = vpop.xlane.xlu0 %532
    %v534 = vsel %vm473, %v515, 0.0
    %535 = vadd.xlane.f32.xlu0 %v534
    %v536 = vpop.xlane.xlu0 %535
    %v537 = vsel %vm473, %v517, 0.0
    %538 = vadd.xlane.f32.xlu0 %v537
    %v539 = vpop.xlane.xlu0 %538
    %v540 = vsel %vm473, %v519, 0.0
    %541 = vadd.xlane.f32.xlu0 %v540
    %v542 = vpop.xlane.xlu0 %541
    %v543 = vsel %vm473, %v521, 0.0
    %544 = vadd.xlane.f32.xlu0 %v543
    %v545 = vpop.xlane.xlu0 %544
    %v546 = vrcp.pop %v524
    %v547 = vmul.f32 %v524, %v546
    %v548 = vsub.f32 1.0, %v547
    %v549 = vmul.f32 %v546, %v548
    %v550 = vadd.f32 %v546, %v549
    %vm551 = vweird.f32 %v524
    %vm552 = vweird.f32 %v546
    %vm553 = vmor %vm551, %vm552
    %v554 = vsel %vm553, %v546, %v550
    %v555 = vand.u32 2147483647, %v524
    %vm556 = vcmp.eq.f32.partialorder %v555, 8.507059e+37
    %v557 = vand.u32 %v524, 2147483648
    %v558 = vor.u32 1.1754944e-38, %v557
    %v559 = vsel %vm556, %v558, %v554
    %v560 = vmul.f32 %v507, %v559
    %v561 = vrcp.pop %v527
    %v562 = vmul.f32 %v527, %v561
    %v563 = vsub.f32 1.0, %v562
    %v564 = vmul.f32 %v561, %v563
    %v565 = vadd.f32 %v561, %v564
    %vm566 = vweird.f32 %v527
    %vm567 = vweird.f32 %v561
    %vm568 = vmor %vm566, %vm567
    %v569 = vsel %vm568, %v561, %v565
    %v570 = vand.u32 2147483647, %v527
    %vm571 = vcmp.eq.f32.partialorder %v570, 8.507059e+37
    %v572 = vand.u32 %v527, 2147483648
    %v573 = vor.u32 1.1754944e-38, %v572
    %v574 = vsel %vm571, %v573, %v569
    %v575 = vmul.f32 %v509, %v574
    %v576 = vrcp.pop %v530
    %v577 = vmul.f32 %v530, %v576
    %v578 = vsub.f32 1.0, %v577
    %v579 = vmul.f32 %v576, %v578
    %v580 = vadd.f32 %v576, %v579
    %vm581 = vweird.f32 %v530
    %vm582 = vweird.f32 %v576
    %vm583 = vmor %vm581, %vm582
    %v584 = vsel %vm583, %v576, %v580
    %v585 = vand.u32 2147483647, %v530
    %vm586 = vcmp.eq.f32.partialorder %v585, 8.507059e+37
    %v587 = vand.u32 %v530, 2147483648
    %v588 = vor.u32 1.1754944e-38, %v587
    %v589 = vsel %vm586, %v588, %v584
    %v590 = vmul.f32 %v511, %v589
    %v591 = vrcp.pop %v533
    %v592 = vmul.f32 %v533, %v591
    %v593 = vsub.f32 1.0, %v592
    %v594 = vmul.f32 %v591, %v593
    %v595 = vadd.f32 %v591, %v594
    %vm596 = vweird.f32 %v533
    %vm597 = vweird.f32 %v591
    %vm598 = vmor %vm596, %vm597
    %v599 = vsel %vm598, %v591, %v595
    %v600 = vand.u32 2147483647, %v533
    %vm601 = vcmp.eq.f32.partialorder %v600, 8.507059e+37
    %v602 = vand.u32 %v533, 2147483648
    %v603 = vor.u32 1.1754944e-38, %v602
    %v604 = vsel %vm601, %v603, %v599
    %v605 = vmul.f32 %v513, %v604
    %v606 = vrcp.pop %v536
    %v607 = vmul.f32 %v536, %v606
    %v608 = vsub.f32 1.0, %v607
    %v609 = vmul.f32 %v606, %v608
    %v610 = vadd.f32 %v606, %v609
    %vm611 = vweird.f32 %v536
    %vm612 = vweird.f32 %v606
    %vm613 = vmor %vm611, %vm612
    %v614 = vsel %vm613, %v606, %v610
    %v615 = vand.u32 2147483647, %v536
    %vm616 = vcmp.eq.f32.partialorder %v615, 8.507059e+37
    %v617 = vand.u32 %v536, 2147483648
    %v618 = vor.u32 1.1754944e-38, %v617
    %v619 = vsel %vm616, %v618, %v614
    %v620 = vmul.f32 %v515, %v619
    %v621 = vrcp.pop %v539
    %v622 = vmul.f32 %v539, %v621
    %v623 = vsub.f32 1.0, %v622
    %v624 = vmul.f32 %v621, %v623
    %v625 = vadd.f32 %v621, %v624
    %vm626 = vweird.f32 %v539
    %vm627 = vweird.f32 %v621
    %vm628 = vmor %vm626, %vm627
    %v629 = vsel %vm628, %v621, %v625
    %v630 = vand.u32 2147483647, %v539
    %vm631 = vcmp.eq.f32.partialorder %v630, 8.507059e+37
    %v632 = vand.u32 %v539, 2147483648
    %v633 = vor.u32 1.1754944e-38, %v632
    %v634 = vsel %vm631, %v633, %v629
    %v635 = vmul.f32 %v517, %v634
    %v636 = vrcp.pop %v542
    %v637 = vmul.f32 %v542, %v636
    %v638 = vsub.f32 1.0, %v637
    %v639 = vmul.f32 %v636, %v638
    %v640 = vadd.f32 %v636, %v639
    %vm641 = vweird.f32 %v542
    %vm642 = vweird.f32 %v636
    %vm643 = vmor %vm641, %vm642
    %v644 = vsel %vm643, %v636, %v640
    %v645 = vand.u32 2147483647, %v542
    %vm646 = vcmp.eq.f32.partialorder %v645, 8.507059e+37
    %v647 = vand.u32 %v542, 2147483648
    %v648 = vor.u32 1.1754944e-38, %v647
    %v649 = vsel %vm646, %v648, %v644
    %v650 = vmul.f32 %v519, %v649
    %v651 = vrcp.pop %v545
    %v652 = vmul.f32 %v545, %v651
    %v653 = vsub.f32 1.0, %v652
    %v654 = vmul.f32 %v651, %v653
    %v655 = vadd.f32 %v651, %v654
    %vm656 = vweird.f32 %v545
    %vm657 = vweird.f32 %v651
    %vm658 = vmor %vm656, %vm657
    %v659 = vsel %vm658, %v651, %v655
    %v660 = vand.u32 2147483647, %v545
    %vm661 = vcmp.eq.f32.partialorder %v660, 8.507059e+37
    %v662 = vand.u32 %v545, 2147483648
    %v663 = vor.u32 1.1754944e-38, %v662
    %v664 = vsel %vm661, %v663, %v659
    %v665 = vmul.f32 %v521, %v664
    %666 = vrot.lane.b32.xlu0 %v313, 64
    %v667 = vpop.permute.xlu0 %666
    %668 = vrot.lane.b32.xlu0 %v316, 64
    %v669 = vpop.permute.xlu0 %668
    %v673 = vsel %vm473, %v560, 0
    %v676 = vsel %vm473, %v575, 0
    %678 = vmatpush.msra.mxu0 0.0
    %679 = vmatpush.msra.mxu0 0.0
    %680 = vmatpush.msra.mxu0 0.0
    %681 = vmatpush.msra.mxu0 0.0
    %682 = vmatpush.msra.mxu0 0.0
    %683 = vmatpush.msra.mxu0 0.0
    %684 = vmatpush.msra.mxu0 0.0
    %685 = vmatpush.msra.mxu0 0.0
    %686 = vmatpush.msra.mxu0 0.0
    %687 = vmatpush.msra.mxu0 0.0
    %688 = vmatpush.msra.mxu0 0.0
    %689 = vmatpush.msra.mxu0 0.0
    %690 = vmatpush.msra.mxu0 0.0
    %691 = vmatpush.msra.mxu0 0.0
    %692 = vmatpush.msra.mxu0 %v669
    %693 = vmatpush.msra.mxu0 %v667
    %694 = vmatmul.f32.gmra.mxu0 %v673
    %v695 = vpop.f32.mrf.mxu0
    %v696 = vadd.f32 0.0, %v695
    %697 = vmatmul.f32.gmra.mxu0 %v676
    %v698 = vpop.f32.mrf.mxu0
    %v699 = vadd.f32 0.0, %v698
    %700 = vdwg.mxu0
    %701 = vrot.lane.b32.xlu0 %v321, 64
    %v702 = vpop.permute.xlu0 %701
    %703 = vrot.lane.b32.xlu0 %v323, 64
    %v704 = vpop.permute.xlu0 %703
    %v708 = vsel %vm473, %v590, 0
    %v711 = vsel %vm473, %v605, 0
    %713 = vmatpush.msra.mxu0 0.0
    %714 = vmatpush.msra.mxu0 0.0
    %715 = vmatpush.msra.mxu0 0.0
    %716 = vmatpush.msra.mxu0 0.0
    %717 = vmatpush.msra.mxu0 0.0
    %718 = vmatpush.msra.mxu0 0.0
    %719 = vmatpush.msra.mxu0 0.0
    %720 = vmatpush.msra.mxu0 0.0
    %721 = vmatpush.msra.mxu0 0.0
    %722 = vmatpush.msra.mxu0 0.0
    %723 = vmatpush.msra.mxu0 0.0
    %724 = vmatpush.msra.mxu0 0.0
    %725 = vmatpush.msra.mxu0 0.0
    %726 = vmatpush.msra.mxu0 0.0
    %727 = vmatpush.msra.mxu0 %v704
    %728 = vmatpush.msra.mxu0 %v702
    %729 = vmatmul.f32.gmra.mxu0 %v708
    %v730 = vpop.f32.mrf.mxu0
    %v731 = vadd.f32 0.0, %v730
    %732 = vmatmul.f32.gmra.mxu0 %v711
    %v733 = vpop.f32.mrf.mxu0
    %v734 = vadd.f32 0.0, %v733
    %735 = vdwg.mxu0
    %736 = vrot.lane.b32.xlu0 %v325, 64
    %v737 = vpop.permute.xlu0 %736
    %738 = vrot.lane.b32.xlu0 %v327, 64
    %v739 = vpop.permute.xlu0 %738
    %v743 = vsel %vm473, %v620, 0
    %v746 = vsel %vm473, %v635, 0
    %748 = vmatpush.msra.mxu0 0.0
    %749 = vmatpush.msra.mxu0 0.0
    %750 = vmatpush.msra.mxu0 0.0
    %751 = vmatpush.msra.mxu0 0.0
    %752 = vmatpush.msra.mxu0 0.0
    %753 = vmatpush.msra.mxu0 0.0
    %754 = vmatpush.msra.mxu0 0.0
    %755 = vmatpush.msra.mxu0 0.0
    %756 = vmatpush.msra.mxu0 0.0
    %757 = vmatpush.msra.mxu0 0.0
    %758 = vmatpush.msra.mxu0 0.0
    %759 = vmatpush.msra.mxu0 0.0
    %760 = vmatpush.msra.mxu0 0.0
    %761 = vmatpush.msra.mxu0 0.0
    %762 = vmatpush.msra.mxu0 %v739
    %763 = vmatpush.msra.mxu0 %v737
    %764 = vmatmul.f32.gmra.mxu0 %v743
    %v765 = vpop.f32.mrf.mxu0
    %v766 = vadd.f32 0.0, %v765
    %767 = vmatmul.f32.gmra.mxu0 %v746
    %v768 = vpop.f32.mrf.mxu0
    %v769 = vadd.f32 0.0, %v768
    %770 = vdwg.mxu0
    %771 = vrot.lane.b32.xlu0 %v329, 64
    %v772 = vpop.permute.xlu0 %771
    %773 = vrot.lane.b32.xlu0 %v331, 64
    %v774 = vpop.permute.xlu0 %773
    %v778 = vsel %vm473, %v650, 0
    %v781 = vsel %vm473, %v665, 0
    %783 = vmatpush.msra.mxu0 0.0
    %784 = vmatpush.msra.mxu0 0.0
    %785 = vmatpush.msra.mxu0 0.0
    %786 = vmatpush.msra.mxu0 0.0
    %787 = vmatpush.msra.mxu0 0.0
    %788 = vmatpush.msra.mxu0 0.0
    %789 = vmatpush.msra.mxu0 0.0
    %790 = vmatpush.msra.mxu0 0.0
    %791 = vmatpush.msra.mxu0 0.0
    %792 = vmatpush.msra.mxu0 0.0
    %793 = vmatpush.msra.mxu0 0.0
    %794 = vmatpush.msra.mxu0 0.0
    %795 = vmatpush.msra.mxu0 0.0
    %796 = vmatpush.msra.mxu0 0.0
    %797 = vmatpush.msra.mxu0 %v774
    %798 = vmatpush.msra.mxu0 %v772
    %799 = vmatmul.f32.gmra.mxu0 %v778
    %v800 = vpop.f32.mrf.mxu0
    %v801 = vadd.f32 0.0, %v800
    %802 = vmatmul.f32.gmra.mxu0 %v781
    %v803 = vpop.f32.mrf.mxu0
    %v804 = vadd.f32 0.0, %v803
    %805 = vdwg.mxu0
    %808 = vrot.lane.b32.xlu0 %v731, 8
    %v809 = vpop.permute.xlu0 %808
    %810 = vrot.lane.b32.xlu0 %v734, 8
    %v811 = vpop.permute.xlu0 %810
    %816 = vrot.lane.b32.xlu0 %v766, 16
    %v817 = vpop.permute.xlu0 %816
    %818 = vrot.lane.b32.xlu0 %v769, 16
    %v819 = vpop.permute.xlu0 %818
    %824 = vrot.lane.b32.xlu0 %v801, 24
    %v825 = vpop.permute.xlu0 %824
    %826 = vrot.lane.b32.xlu0 %v804, 24
    %v827 = vpop.permute.xlu0 %826
    %v830 = vsel %vm336, %v696, %v809
    %v831 = vsel %vm336, %v699, %v811
    %v832 = vsel %vm473, %v830, %v817
    %v833 = vsel %vm473, %v831, %v819
    %vm834 = vcmask 195584
    %v835 = vsel %vm834, %v832, %v825
    %v836 = vsel %vm834, %v833, %v827
    %v837 = vld [vmem:[%s4] sm:$0xff]
    %v838 = vld [vmem:[%s4 + $0x8] sm:$0xff]
    %v839 = vld [vmem:[%s4 + $0x10] sm:$0xff]
    %v840 = vld [vmem:[%s4 + $0x18] sm:$0xff]
    %v841 = vld [vmem:[#allocation7] sm:$0x1]
    %v843 = vperm.slane %v841, 0
    %v846 = vsel %vm288, %v835, 0
    %v849 = vsel %vm288, %v836, 0
    %851 = vmatpush.msra.mxu0 0.0
    %852 = vmatpush.msra.mxu0 0.0
    %853 = vmatpush.msra.mxu0 0.0
    %854 = vmatpush.msra.mxu0 0.0
    %855 = vmatpush.msra.mxu0 0.0
    %856 = vmatpush.msra.mxu0 0.0
    %857 = vmatpush.msra.mxu0 0.0
    %858 = vmatpush.msra.mxu0 0.0
    %859 = vmatpush.msra.mxu0 0.0
    %860 = vmatpush.msra.mxu0 0.0
    %861 = vmatpush.msra.mxu0 0.0
    %862 = vmatpush.msra.mxu0 0.0
    %863 = vmatpush.msra.mxu0 %v840
    %864 = vmatpush.msra.mxu0 %v839
    %865 = vmatpush.msra.mxu0 %v838
    %866 = vmatpush.msra.mxu0 %v837
    %867 = vmatmul.f32.gmra.mxu0 %v846
    %v868 = vpop.f32.mrf.mxu0
    %v869 = vadd.f32 %v843, %v868
    %870 = vmatmul.f32.gmra.mxu0 %v849
    %v871 = vpop.f32.mrf.mxu0
    %v872 = vadd.f32 %v843, %v871
    %873 = vdwg.mxu0
    %v874 = vadd.f32 %v272, %v869
    %v875 = vadd.f32 %v273, %v872
    %v876 = vsel %vm288, %v874, 0.0
    %877 = vadd.xlane.f32.xlu0 %v876
    %v878 = vpop.xlane.xlu0 %877
    %v879 = vsel %vm288, %v875, 0.0
    %880 = vadd.xlane.f32.xlu0 %v879
    %v881 = vpop.xlane.xlu0 %880
    %v882 = vrcp.pop 32.0
    %v883 = vmul.f32 32.0, %v882
    %v884 = vsub.f32 1.0, %v883
    %v885 = vmul.f32 %v882, %v884
    %v886 = vadd.f32 %v882, %v885
    %vm887 = vweird.f32 %v882
    %v888 = vsel %vm887, %v882, %v886
    %v889 = vmul.f32 %v878, %v888
    %v890 = vmul.f32 %v881, %v888
    %v891 = vmul.f32 %v874, %v874
    %v892 = vmul.f32 %v875, %v875
    %v893 = vsel %vm288, %v891, 0.0
    %894 = vadd.xlane.f32.xlu0 %v893
    %v895 = vpop.xlane.xlu0 %894
    %v896 = vsel %vm288, %v892, 0.0
    %897 = vadd.xlane.f32.xlu0 %v896
    %v898 = vpop.xlane.xlu0 %897
    %v899 = vmul.f32 %v895, %v888
    %v900 = vmul.f32 %v898, %v888
    %v901 = vmul.f32 %v889, %v889
    %v902 = vmul.f32 %v890, %v890
    %v903 = vsub.f32 %v899, %v901
    %v904 = vsub.f32 %v900, %v902
    %v905 = vsub.f32 %v874, %v889
    %v906 = vsub.f32 %v875, %v890
    %v907 = vadd.f32 %v903, 1e-05
    %v908 = vadd.f32 %v904, 1e-05
    %v909 = vrsqrt.pop %v907
    %v910 = vmul.f32 %v909, %v907
    %v911 = vmul.f32 %v910, %v909
    %v912 = vmul.f32 0.5, %v911
    %v913 = vsub.f32 1.5, %v912
    %v914 = vmul.f32 %v909, %v913
    %vm915 = vweird.f32 %v907
    %vm916 = vweird.f32 %v909
    %vm917 = vmor %vm915, %vm916
    %v918 = vsel %vm917, %v909, %v914
    %v919 = vrsqrt.pop %v908
    %v920 = vmul.f32 %v919, %v908
    %v921 = vmul.f32 %v920, %v919
    %v922 = vmul.f32 0.5, %v921
    %v923 = vsub.f32 1.5, %v922
    %v924 = vmul.f32 %v919, %v923
    %vm925 = vweird.f32 %v908
    %vm926 = vweird.f32 %v919
    %vm927 = vmor %vm925, %vm926
    %v928 = vsel %vm927, %v919, %v924
    %v929 = vmul.f32 %v905, %v918
    %v930 = vmul.f32 %v906, %v928
    %v931 = vld [vmem:[#allocation20] sm:$0x1]
    %v933 = vperm.slane %v931, 0
    %v935 = vmul.f32 %v929, %v933
    %v936 = vmul.f32 %v930, %v933
    %v937 = vld [vmem:[#allocation22] sm:$0x1]
    %v939 = vperm.slane %v937, 0
    %v941 = vadd.f32 %v935, %v939
    %v942 = vadd.f32 %v936, %v939
    %v943 = vld [vmem:[%s6] sm:$0xff]
    %v944 = vld [vmem:[%s6 + $0x8] sm:$0xff]
    %v945 = vld [vmem:[%s6 + $0x10] sm:$0xff]
    %v946 = vld [vmem:[%s6 + $0x18] sm:$0xff]
    %v947 = vld [vmem:[#allocation8] sm:$0x1]
    %v949 = vperm.slane %v947, 0
    %v952 = vsel %vm288, %v941, 0
    %v955 = vsel %vm288, %v942, 0
    %957 = vmatpush.msra.mxu0 0.0
    %958 = vmatpush.msra.mxu0 0.0
    %959 = vmatpush.msra.mxu0 0.0
    %960 = vmatpush.msra.mxu0 0.0
    %961 = vmatpush.msra.mxu0 0.0
    %962 = vmatpush.msra.mxu0 0.0
    %963 = vmatpush.msra.mxu0 0.0
    %964 = vmatpush.msra.mxu0 0.0
    %965 = vmatpush.msra.mxu0 0.0
    %966 = vmatpush.msra.mxu0 0.0
    %967 = vmatpush.msra.mxu0 0.0
    %968 = vmatpush.msra.mxu0 0.0
    %969 = vmatpush.msra.mxu0 %v946
    %970 = vmatpush.msra.mxu0 %v945
    %971 = vmatpush.msra.mxu0 %v944
    %972 = vmatpush.msra.mxu0 %v943
    %973 = vmatmul.f32.gmra.mxu0 %v952
    %v974 = vpop.f32.mrf.mxu0
    %v975 = vadd.f32 %v949, %v974
    %976 = vmatmul.f32.gmra.mxu0 %v955
    %v977 = vpop.f32.mrf.mxu0
    %v978 = vadd.f32 %v949, %v977
    %979 = vdwg.mxu0
    %v980 = vld [vmem:[#allocation10] sm:$0xff]
    %v981 = vld [vmem:[#allocation10 + $0x8] sm:$0xff]
    %v982 = vld [vmem:[#allocation10 + $0x10] sm:$0xff]
    %v983 = vld [vmem:[#allocation10 + $0x18] sm:$0xff]
    %v984 = vld [vmem:[#allocation11] sm:$0x1]
    %v986 = vperm.slane %v984, 0
    %v989 = vsel %vm288, %v274, 0
    %v992 = vsel %vm288, %v275, 0
    %994 = vmatpush.msra.mxu0 0.0
    %995 = vmatpush.msra.mxu0 0.0
    %996 = vmatpush.msra.mxu0 0.0
    %997 = vmatpush.msra.mxu0 0.0
    %998 = vmatpush.msra.mxu0 0.0
    %999 = vmatpush.msra.mxu0 0.0
    %1000 = vmatpush.msra.mxu0 0.0
    %1001 = vmatpush.msra.mxu0 0.0
    %1002 = vmatpush.msra.mxu0 0.0
    %1003 = vmatpush.msra.mxu0 0.0
    %1004 = vmatpush.msra.mxu0 0.0
    %1005 = vmatpush.msra.mxu0 0.0
    %1006 = vmatpush.msra.mxu0 %v983
    %1007 = vmatpush.msra.mxu0 %v982
    %1008 = vmatpush.msra.mxu0 %v981
    %1009 = vmatpush.msra.mxu0 %v980
    %1010 = vmatmul.f32.gmra.mxu0 %v989
    %v1011 = vpop.f32.mrf.mxu0
    %v1012 = vadd.f32 %v986, %v1011
    %1013 = vmatmul.f32.gmra.mxu0 %v992
    %v1014 = vpop.f32.mrf.mxu0
    %v1015 = vadd.f32 %v986, %v1014
    %1016 = vdwg.mxu0
    %1019 = vrot.lane.b32.xlu0 %v975, 120
    %v1020 = vpop.permute.xlu0 %1019
    %1021 = vrot.lane.b32.xlu0 %v978, 120
    %v1022 = vpop.permute.xlu0 %1021
    %1023 = vrot.lane.b32.xlu0 %v975, 112
    %v1024 = vpop.permute.xlu0 %1023
    %1025 = vrot.lane.b32.xlu0 %v978, 112
    %v1026 = vpop.permute.xlu0 %1025
    %1027 = vrot.lane.b32.xlu0 %v975, 104
    %v1028 = vpop.permute.xlu0 %1027
    %1029 = vrot.lane.b32.xlu0 %v978, 104
    %v1030 = vpop.permute.xlu0 %1029
    %1033 = vrot.lane.b32.xlu0 %v1012, 120
    %v1034 = vpop.permute.xlu0 %1033
    %1035 = vrot.lane.b32.xlu0 %v1015, 120
    %v1036 = vpop.permute.xlu0 %1035
    %1037 = vrot.lane.b32.xlu0 %v1012, 112
    %v1038 = vpop.permute.xlu0 %1037
    %1039 = vrot.lane.b32.xlu0 %v1015, 112
    %v1040 = vpop.permute.xlu0 %1039
    %1041 = vrot.lane.b32.xlu0 %v1012, 104
    %v1042 = vpop.permute.xlu0 %1041
    %1043 = vrot.lane.b32.xlu0 %v1015, 104
    %v1044 = vpop.permute.xlu0 %1043
    %v1045 = vsel %vm336, %v975, 0
    %v1047 = vsel %vm336, %v978, 0
    %v1049 = vsel %vm336, %v1012, 0
    %v1051 = vsel %vm336, %v1015, 0
    %1053 = vmatpush.xpose.msra.mxu0 0.0
    %1054 = vmatpush.xpose.msra.mxu0 0.0
    %1055 = vmatpush.xpose.msra.mxu0 0.0
    %1056 = vmatpush.xpose.msra.mxu0 0.0
    %1057 = vmatpush.xpose.msra.mxu0 0.0
    %1058 = vmatpush.xpose.msra.mxu0 0.0
    %1059 = vmatpush.xpose.msra.mxu0 0.0
    %1060 = vmatpush.xpose.msra.mxu0 0.0
    %1061 = vmatpush.xpose.msra.mxu0 0.0
    %1062 = vmatpush.xpose.msra.mxu0 0.0
    %1063 = vmatpush.xpose.msra.mxu0 0.0
    %1064 = vmatpush.xpose.msra.mxu0 0.0
    %1065 = vmatpush.xpose.msra.mxu0 0.0
    %1066 = vmatpush.xpose.msra.mxu0 0.0
    %1067 = vmatpush.xpose.msra.mxu0 %v1051
    %1068 = vmatpush.xpose.msra.mxu0 %v1049
    %1069 = vmatmul.f32.gmra.mxu0 %v1045
    %v1070 = vpop.f32.mrf.mxu0
    %v1071 = vadd.f32 %v278, %v1070
    %1072 = vmatmul.f32.gmra.mxu0 %v1047
    %v1073 = vpop.f32.mrf.mxu0
    %v1074 = vadd.f32 %v279, %v1073
    %1075 = vdwg.mxu0
    %v1076 = vsel %vm336, %v1020, 0
    %v1078 = vsel %vm336, %v1022, 0
    %v1080 = vsel %vm336, %v1034, 0
    %v1082 = vsel %vm336, %v1036, 0
    %1084 = vmatpush.xpose.msra.mxu0 0.0
    %1085 = vmatpush.xpose.msra.mxu0 0.0
    %1086 = vmatpush.xpose.msra.mxu0 0.0
    %1087 = vmatpush.xpose.msra.mxu0 0.0
    %1088 = vmatpush.xpose.msra.mxu0 0.0
    %1089 = vmatpush.xpose.msra.mxu0 0.0
    %1090 = vmatpush.xpose.msra.mxu0 0.0
    %1091 = vmatpush.xpose.msra.mxu0 0.0
    %1092 = vmatpush.xpose.msra.mxu0 0.0
    %1093 = vmatpush.xpose.msra.mxu0 0.0
    %1094 = vmatpush.xpose.msra.mxu0 0.0
    %1095 = vmatpush.xpose.msra.mxu0 0.0
    %1096 = vmatpush.xpose.msra.mxu0 0.0
    %1097 = vmatpush.xpose.msra.mxu0 0.0
    %1098 = vmatpush.xpose.msra.mxu0 %v1082
    %1099 = vmatpush.xpose.msra.mxu0 %v1080
    %1100 = vmatmul.f32.gmra.mxu0 %v1076
    %v1101 = vpop.f32.mrf.mxu0
    %v1102 = vadd.f32 %v278, %v1101
    %1103 = vmatmul.f32.gmra.mxu0 %v1078
    %v1104 = vpop.f32.mrf.mxu0
    %v1105 = vadd.f32 %v279, %v1104
    %1106 = vdwg.mxu0
    %v1107 = vsel %vm336, %v1024, 0
    %v1109 = vsel %vm336, %v1026, 0
    %v1111 = vsel %vm336, %v1038, 0
    %v1113 = vsel %vm336, %v1040, 0
    %1115 = vmatpush.xpose.msra.mxu0 0.0
    %1116 = vmatpush.xpose.msra.mxu0 0.0
    %1117 = vmatpush.xpose.msra.mxu0 0.0
    %1118 = vmatpush.xpose.msra.mxu0 0.0
    %1119 = vmatpush.xpose.msra.mxu0 0.0
    %1120 = vmatpush.xpose.msra.mxu0 0.0
    %1121 = vmatpush.xpose.msra.mxu0 0.0
    %1122 = vmatpush.xpose.msra.mxu0 0.0
    %1123 = vmatpush.xpose.msra.mxu0 0.0
    %1124 = vmatpush.xpose.msra.mxu0 0.0
    %1125 = vmatpush.xpose.msra.mxu0 0.0
    %1126 = vmatpush.xpose.msra.mxu0 0.0
    %1127 = vmatpush.xpose.msra.mxu0 0.0
    %1128 = vmatpush.xpose.msra.mxu0 0.0
    %1129 = vmatpush.xpose.msra.mxu0 %v1113
    %1130 = vmatpush.xpose.msra.mxu0 %v1111
    %1131 = vmatmul.f32.gmra.mxu0 %v1107
    %v1132 = vpop.f32.mrf.mxu0
    %v1133 = vadd.f32 %v278, %v1132
    %1134 = vmatmul.f32.gmra.mxu0 %v1109
    %v1135 = vpop.f32.mrf.mxu0
    %v1136 = vadd.f32 %v279, %v1135
    %1137 = vdwg.mxu0
    %v1138 = vsel %vm336, %v1028, 0
    %v1140 = vsel %vm336, %v1030, 0
    %v1142 = vsel %vm336, %v1042, 0
    %v1144 = vsel %vm336, %v1044, 0
    %1146 = vmatpush.xpose.msra.mxu0 0.0
    %1147 = vmatpush.xpose.msra.mxu0 0.0
    %1148 = vmatpush.xpose.msra.mxu0 0.0
    %1149 = vmatpush.xpose.msra.mxu0 0.0
    %1150 = vmatpush.xpose.msra.mxu0 0.0
    %1151 = vmatpush.xpose.msra.mxu0 0.0
    %1152 = vmatpush.xpose.msra.mxu0 0.0
    %1153 = vmatpush.xpose.msra.mxu0 0.0
    %1154 = vmatpush.xpose.msra.mxu0 0.0
    %1155 = vmatpush.xpose.msra.mxu0 0.0
    %1156 = vmatpush.xpose.msra.mxu0 0.0
    %1157 = vmatpush.xpose.msra.mxu0 0.0
    %1158 = vmatpush.xpose.msra.mxu0 0.0
    %1159 = vmatpush.xpose.msra.mxu0 0.0
    %1160 = vmatpush.xpose.msra.mxu0 %v1144
    %1161 = vmatpush.xpose.msra.mxu0 %v1142
    %1162 = vmatmul.f32.gmra.mxu0 %v1138
    %v1163 = vpop.f32.mrf.mxu0
    %v1164 = vadd.f32 %v278, %v1163
    %1165 = vmatmul.f32.gmra.mxu0 %v1140
    %v1166 = vpop.f32.mrf.mxu0
    %v1167 = vadd.f32 %v279, %v1166
    %1168 = vdwg.mxu0
    %v1169 = vsel %vm473, %v1071, -inf
    %1170 = vmax.xlane.f32.xlu0 %v1169
    %v1171 = vpop.xlane.xlu0 %1170
    %v1172 = vsel %vm473, %v1074, -inf
    %1173 = vmax.xlane.f32.xlu0 %v1172
    %v1174 = vpop.xlane.xlu0 %1173
    %v1175 = vsel %vm473, %v1102, -inf
    %1176 = vmax.xlane.f32.xlu0 %v1175
    %v1177 = vpop.xlane.xlu0 %1176
    %v1178 = vsel %vm473, %v1105, -inf
    %1179 = vmax.xlane.f32.xlu0 %v1178
    %v1180 = vpop.xlane.xlu0 %1179
    %v1181 = vsel %vm473, %v1133, -inf
    %1182 = vmax.xlane.f32.xlu0 %v1181
    %v1183 = vpop.xlane.xlu0 %1182
    %v1184 = vsel %vm473, %v1136, -inf
    %1185 = vmax.xlane.f32.xlu0 %v1184
    %v1186 = vpop.xlane.xlu0 %1185
    %v1187 = vsel %vm473, %v1164, -inf
    %1188 = vmax.xlane.f32.xlu0 %v1187
    %v1189 = vpop.xlane.xlu0 %1188
    %v1190 = vsel %vm473, %v1167, -inf
    %1191 = vmax.xlane.f32.xlu0 %v1190
    %v1192 = vpop.xlane.xlu0 %1191
    %v1193 = vsub.f32 %v1071, %v1171
    %v1194 = vsub.f32 %v1074, %v1174
    %v1195 = vsub.f32 %v1102, %v1177
    %v1196 = vsub.f32 %v1105, %v1180
    %v1197 = vsub.f32 %v1133, %v1183
    %v1198 = vsub.f32 %v1136, %v1186
    %v1199 = vsub.f32 %v1164, %v1189
    %v1200 = vsub.f32 %v1167, %v1192
    %v1201 = vmul.f32 %v1193, 1.442695
    %v1202 = vpow.pop %v1201
    %v1203 = vmul.f32 %v1194, 1.442695
    %v1204 = vpow.pop %v1203
    %v1205 = vmul.f32 %v1195, 1.442695
    %v1206 = vpow.pop %v1205
    %v1207 = vmul.f32 %v1196, 1.442695
    %v1208 = vpow.pop %v1207
    %v1209 = vmul.f32 %v1197, 1.442695
    %v1210 = vpow.pop %v1209
    %v1211 = vmul.f32 %v1198, 1.442695
    %v1212 = vpow.pop %v1211
    %v1213 = vmul.f32 %v1199, 1.442695
    %v1214 = vpow.pop %v1213
    %v1215 = vmul.f32 %v1200, 1.442695
    %v1216 = vpow.pop %v1215
    %v1217 = vsel %vm473, %v1202, 0.0
    %1218 = vadd.xlane.f32.xlu0 %v1217
    %v1219 = vpop.xlane.xlu0 %1218
    %v1220 = vsel %vm473, %v1204, 0.0
    %1221 = vadd.xlane.f32.xlu0 %v1220
    %v1222 = vpop.xlane.xlu0 %1221
    %v1223 = vsel %vm473, %v1206, 0.0
    %1224 = vadd.xlane.f32.xlu0 %v1223
    %v1225 = vpop.xlane.xlu0 %1224
    %v1226 = vsel %vm473, %v1208, 0.0
    %1227 = vadd.xlane.f32.xlu0 %v1226
    %v1228 = vpop.xlane.xlu0 %1227
    %v1229 = vsel %vm473, %v1210, 0.0
    %1230 = vadd.xlane.f32.xlu0 %v1229
    %v1231 = vpop.xlane.xlu0 %1230
    %v1232 = vsel %vm473, %v1212, 0.0
    %1233 = vadd.xlane.f32.xlu0 %v1232
    %v1234 = vpop.xlane.xlu0 %1233
    %v1235 = vsel %vm473, %v1214, 0.0
    %1236 = vadd.xlane.f32.xlu0 %v1235
    %v1237 = vpop.xlane.xlu0 %1236
    %v1238 = vsel %vm473, %v1216, 0.0
    %1239 = vadd.xlane.f32.xlu0 %v1238
    %v1240 = vpop.xlane.xlu0 %1239
    %v1241 = vrcp.pop %v1219
    %v1242 = vmul.f32 %v1219, %v1241
    %v1243 = vsub.f32 1.0, %v1242
    %v1244 = vmul.f32 %v1241, %v1243
    %v1245 = vadd.f32 %v1241, %v1244
    %vm1246 = vweird.f32 %v1219
    %vm1247 = vweird.f32 %v1241
    %vm1248 = vmor %vm1246, %vm1247
    %v1249 = vsel %vm1248, %v1241, %v1245
    %v1250 = vand.u32 2147483647, %v1219
    %vm1251 = vcmp.eq.f32.partialorder %v1250, 8.507059e+37
    %v1252 = vand.u32 %v1219, 2147483648
    %v1253 = vor.u32 1.1754944e-38, %v1252
    %v1254 = vsel %vm1251, %v1253, %v1249
    %v1255 = vmul.f32 %v1202, %v1254
    %v1256 = vrcp.pop %v1222
    %v1257 = vmul.f32 %v1222, %v1256
    %v1258 = vsub.f32 1.0, %v1257
    %v1259 = vmul.f32 %v1256, %v1258
    %v1260 = vadd.f32 %v1256, %v1259
    %vm1261 = vweird.f32 %v1222
    %vm1262 = vweird.f32 %v1256
    %vm1263 = vmor %vm1261, %vm1262
    %v1264 = vsel %vm1263, %v1256, %v1260
    %v1265 = vand.u32 2147483647, %v1222
    %vm1266 = vcmp.eq.f32.partialorder %v1265, 8.507059e+37
    %v1267 = vand.u32 %v1222, 2147483648
    %v1268 = vor.u32 1.1754944e-38, %v1267
    %v1269 = vsel %vm1266, %v1268, %v1264
    %v1270 = vmul.f32 %v1204, %v1269
    %v1271 = vrcp.pop %v1225
    %v1272 = vmul.f32 %v1225, %v1271
    %v1273 = vsub.f32 1.0, %v1272
    %v1274 = vmul.f32 %v1271, %v1273
    %v1275 = vadd.f32 %v1271, %v1274
    %vm1276 = vweird.f32 %v1225
    %vm1277 = vweird.f32 %v1271
    %vm1278 = vmor %vm1276, %vm1277
    %v1279 = vsel %vm1278, %v1271, %v1275
    %v1280 = vand.u32 2147483647, %v1225
    %vm1281 = vcmp.eq.f32.partialorder %v1280, 8.507059e+37
    %v1282 = vand.u32 %v1225, 2147483648
    %v1283 = vor.u32 1.1754944e-38, %v1282
    %v1284 = vsel %vm1281, %v1283, %v1279
    %v1285 = vmul.f32 %v1206, %v1284
    %v1286 = vrcp.pop %v1228
    %v1287 = vmul.f32 %v1228, %v1286
    %v1288 = vsub.f32 1.0, %v1287
    %v1289 = vmul.f32 %v1286, %v1288
    %v1290 = vadd.f32 %v1286, %v1289
    %vm1291 = vweird.f32 %v1228
    %vm1292 = vweird.f32 %v1286
    %vm1293 = vmor %vm1291, %vm1292
    %v1294 = vsel %vm1293, %v1286, %v1290
    %v1295 = vand.u32 2147483647, %v1228
    %vm1296 = vcmp.eq.f32.partialorder %v1295, 8.507059e+37
    %v1297 = vand.u32 %v1228, 2147483648
    %v1298 = vor.u32 1.1754944e-38, %v1297
    %v1299 = vsel %vm1296, %v1298, %v1294
    %v1300 = vmul.f32 %v1208, %v1299
    %v1301 = vrcp.pop %v1231
    %v1302 = vmul.f32 %v1231, %v1301
    %v1303 = vsub.f32 1.0, %v1302
    %v1304 = vmul.f32 %v1301, %v1303
    %v1305 = vadd.f32 %v1301, %v1304
    %vm1306 = vweird.f32 %v1231
    %vm1307 = vweird.f32 %v1301
    %vm1308 = vmor %vm1306, %vm1307
    %v1309 = vsel %vm1308, %v1301, %v1305
    %v1310 = vand.u32 2147483647, %v1231
    %vm1311 = vcmp.eq.f32.partialorder %v1310, 8.507059e+37
    %v1312 = vand.u32 %v1231, 2147483648
    %v1313 = vor.u32 1.1754944e-38, %v1312
    %v1314 = vsel %vm1311, %v1313, %v1309
    %v1315 = vmul.f32 %v1210, %v1314
    %v1316 = vrcp.pop %v1234
    %v1317 = vmul.f32 %v1234, %v1316
    %v1318 = vsub.f32 1.0, %v1317
    %v1319 = vmul.f32 %v1316, %v1318
    %v1320 = vadd.f32 %v1316, %v1319
    %vm1321 = vweird.f32 %v1234
    %vm1322 = vweird.f32 %v1316
    %vm1323 = vmor %vm1321, %vm1322
    %v1324 = vsel %vm1323, %v1316, %v1320
    %v1325 = vand.u32 2147483647, %v1234
    %vm1326 = vcmp.eq.f32.partialorder %v1325, 8.507059e+37
    %v1327 = vand.u32 %v1234, 2147483648
    %v1328 = vor.u32 1.1754944e-38, %v1327
    %v1329 = vsel %vm1326, %v1328, %v1324
    %v1330 = vmul.f32 %v1212, %v1329
    %v1331 = vrcp.pop %v1237
    %v1332 = vmul.f32 %v1237, %v1331
    %v1333 = vsub.f32 1.0, %v1332
    %v1334 = vmul.f32 %v1331, %v1333
    %v1335 = vadd.f32 %v1331, %v1334
    %vm1336 = vweird.f32 %v1237
    %vm1337 = vweird.f32 %v1331
    %vm1338 = vmor %vm1336, %vm1337
    %v1339 = vsel %vm1338, %v1331, %v1335
    %v1340 = vand.u32 2147483647, %v1237
    %vm1341 = vcmp.eq.f32.partialorder %v1340, 8.507059e+37
    %v1342 = vand.u32 %v1237, 2147483648
    %v1343 = vor.u32 1.1754944e-38, %v1342
    %v1344 = vsel %vm1341, %v1343, %v1339
    %v1345 = vmul.f32 %v1214, %v1344
    %v1346 = vrcp.pop %v1240
    %v1347 = vmul.f32 %v1240, %v1346
    %v1348 = vsub.f32 1.0, %v1347
    %v1349 = vmul.f32 %v1346, %v1348
    %v1350 = vadd.f32 %v1346, %v1349
    %vm1351 = vweird.f32 %v1240
    %vm1352 = vweird.f32 %v1346
    %vm1353 = vmor %vm1351, %vm1352
    %v1354 = vsel %vm1353, %v1346, %v1350
    %v1355 = vand.u32 2147483647, %v1240
    %vm1356 = vcmp.eq.f32.partialorder %v1355, 8.507059e+37
    %v1357 = vand.u32 %v1240, 2147483648
    %v1358 = vor.u32 1.1754944e-38, %v1357
    %v1359 = vsel %vm1356, %v1358, %v1354
    %v1360 = vmul.f32 %v1216, %v1359
    %1361 = vrot.lane.b32.xlu0 %v1012, 96
    %v1362 = vpop.permute.xlu0 %1361
    %1363 = vrot.lane.b32.xlu0 %v1015, 96
    %v1364 = vpop.permute.xlu0 %1363
    %v1368 = vsel %vm473, %v1255, 0
    %v1371 = vsel %vm473, %v1270, 0
    %1373 = vmatpush.msra.mxu0 0.0
    %1374 = vmatpush.msra.mxu0 0.0
    %1375 = vmatpush.msra.mxu0 0.0
    %1376 = vmatpush.msra.mxu0 0.0
    %1377 = vmatpush.msra.mxu0 0.0
    %1378 = vmatpush.msra.mxu0 0.0
    %1379 = vmatpush.msra.mxu0 0.0
    %1380 = vmatpush.msra.mxu0 0.0
    %1381 = vmatpush.msra.mxu0 0.0
    %1382 = vmatpush.msra.mxu0 0.0
    %1383 = vmatpush.msra.mxu0 0.0
    %1384 = vmatpush.msra.mxu0 0.0
    %1385 = vmatpush.msra.mxu0 0.0
    %1386 = vmatpush.msra.mxu0 0.0
    %1387 = vmatpush.msra.mxu0 %v1364
    %1388 = vmatpush.msra.mxu0 %v1362
    %1389 = vmatmul.f32.gmra.mxu0 %v1368
    %v1390 = vpop.f32.mrf.mxu0
    %v1391 = vadd.f32 0.0, %v1390
    %1392 = vmatmul.f32.gmra.mxu0 %v1371
    %v1393 = vpop.f32.mrf.mxu0
    %v1394 = vadd.f32 0.0, %v1393
    %1395 = vdwg.mxu0
    %1396 = vrot.lane.b32.xlu0 %v1034, 96
    %v1397 = vpop.permute.xlu0 %1396
    %1398 = vrot.lane.b32.xlu0 %v1036, 96
    %v1399 = vpop.permute.xlu0 %1398
    %v1403 = vsel %vm473, %v1285, 0
    %v1406 = vsel %vm473, %v1300, 0
    %1408 = vmatpush.msra.mxu0 0.0
    %1409 = vmatpush.msra.mxu0 0.0
    %1410 = vmatpush.msra.mxu0 0.0
    %1411 = vmatpush.msra.mxu0 0.0
    %1412 = vmatpush.msra.mxu0 0.0
    %1413 = vmatpush.msra.mxu0 0.0
    %1414 = vmatpush.msra.mxu0 0.0
    %1415 = vmatpush.msra.mxu0 0.0
    %1416 = vmatpush.msra.mxu0 0.0
    %1417 = vmatpush.msra.mxu0 0.0
    %1418 = vmatpush.msra.mxu0 0.0
    %1419 = vmatpush.msra.mxu0 0.0
    %1420 = vmatpush.msra.mxu0 0.0
    %1421 = vmatpush.msra.mxu0 0.0
    %1422 = vmatpush.msra.mxu0 %v1399
    %1423 = vmatpush.msra.mxu0 %v1397
    %1424 = vmatmul.f32.gmra.mxu0 %v1403
    %v1425 = vpop.f32.mrf.mxu0
    %v1426 = vadd.f32 0.0, %v1425
    %1427 = vmatmul.f32.gmra.mxu0 %v1406
    %v1428 = vpop.f32.mrf.mxu0
    %v1429 = vadd.f32 0.0, %v1428
    %1430 = vdwg.mxu0
    %1431 = vrot.lane.b32.xlu0 %v1038, 96
    %v1432 = vpop.permute.xlu0 %1431
    %1433 = vrot.lane.b32.xlu0 %v1040, 96
    %v1434 = vpop.permute.xlu0 %1433
    %v1438 = vsel %vm473, %v1315, 0
    %v1441 = vsel %vm473, %v1330, 0
    %1443 = vmatpush.msra.mxu0 0.0
    %1444 = vmatpush.msra.mxu0 0.0
    %1445 = vmatpush.msra.mxu0 0.0
    %1446 = vmatpush.msra.mxu0 0.0
    %1447 = vmatpush.msra.mxu0 0.0
    %1448 = vmatpush.msra.mxu0 0.0
    %1449 = vmatpush.msra.mxu0 0.0
    %1450 = vmatpush.msra.mxu0 0.0
    %1451 = vmatpush.msra.mxu0 0.0
    %1452 = vmatpush.msra.mxu0 0.0
    %1453 = vmatpush.msra.mxu0 0.0
    %1454 = vmatpush.msra.mxu0 0.0
    %1455 = vmatpush.msra.mxu0 0.0
    %1456 = vmatpush.msra.mxu0 0.0
    %1457 = vmatpush.msra.mxu0 %v1434
    %1458 = vmatpush.msra.mxu0 %v1432
    %1459 = vmatmul.f32.gmra.mxu0 %v1438
    %v1460 = vpop.f32.mrf.mxu0
    %v1461 = vadd.f32 0.0, %v1460
    %1462 = vmatmul.f32.gmra.mxu0 %v1441
    %v1463 = vpop.f32.mrf.mxu0
    %v1464 = vadd.f32 0.0, %v1463
    %1465 = vdwg.mxu0
    %1466 = vrot.lane.b32.xlu0 %v1042, 96
    %v1467 = vpop.permute.xlu0 %1466
    %1468 = vrot.lane.b32.xlu0 %v1044, 96
    %v1469 = vpop.permute.xlu0 %1468
    %v1473 = vsel %vm473, %v1345, 0
    %v1476 = vsel %vm473, %v1360, 0
    %1478 = vmatpush.msra.mxu0 0.0
    %1479 = vmatpush.msra.mxu0 0.0
    %1480 = vmatpush.msra.mxu0 0.0
    %1481 = vmatpush.msra.mxu0 0.0
    %1482 = vmatpush.msra.mxu0 0.0
    %1483 = vmatpush.msra.mxu0 0.0
    %1484 = vmatpush.msra.mxu0 0.0
    %1485 = vmatpush.msra.mxu0 0.0
    %1486 = vmatpush.msra.mxu0 0.0
    %1487 = vmatpush.msra.mxu0 0.0
    %1488 = vmatpush.msra.mxu0 0.0
    %1489 = vmatpush.msra.mxu0 0.0
    %1490 = vmatpush.msra.mxu0 0.0
    %1491 = vmatpush.msra.mxu0 0.0
    %1492 = vmatpush.msra.mxu0 %v1469
    %1493 = vmatpush.msra.mxu0 %v1467
    %1494 = vmatmul.f32.gmra.mxu0 %v1473
    %v1495 = vpop.f32.mrf.mxu0
    %v1496 = vadd.f32 0.0, %v1495
    %1497 = vmatmul.f32.gmra.mxu0 %v1476
    %v1498 = vpop.f32.mrf.mxu0
    %v1499 = vadd.f32 0.0, %v1498
    %1500 = vdwg.mxu0
    %1503 = vrot.lane.b32.xlu0 %v1426, 8
    %v1504 = vpop.permute.xlu0 %1503
    %1505 = vrot.lane.b32.xlu0 %v1429, 8
    %v1506 = vpop.permute.xlu0 %1505
    %1511 = vrot.lane.b32.xlu0 %v1461, 16
    %v1512 = vpop.permute.xlu0 %1511
    %1513 = vrot.lane.b32.xlu0 %v1464, 16
    %v1514 = vpop.permute.xlu0 %1513
    %1519 = vrot.lane.b32.xlu0 %v1496, 24
    %v1520 = vpop.permute.xlu0 %1519
    %1521 = vrot.lane.b32.xlu0 %v1499, 24
    %v1522 = vpop.permute.xlu0 %1521
    %v1525 = vsel %vm336, %v1391, %v1504
    %v1526 = vsel %vm336, %v1394, %v1506
    %v1527 = vsel %vm473, %v1525, %v1512
    %v1528 = vsel %vm473, %v1526, %v1514
    %v1529 = vsel %vm834, %v1527, %v1520
    %v1530 = vsel %vm834, %v1528, %v1522
    %v1531 = vld [vmem:[#allocation13] sm:$0xff]
    %v1532 = vld [vmem:[#allocation13 + $0x8] sm:$0xff]
    %v1533 = vld [vmem:[#allocation13 + $0x10] sm:$0xff]
    %v1534 = vld [vmem:[#allocation13 + $0x18] sm:$0xff]
    %v1535 = vld [vmem:[#allocation14] sm:$0x1]
    %v1537 = vperm.slane %v1535, 0
    %v1540 = vsel %vm288, %v1529, 0
    %v1543 = vsel %vm288, %v1530, 0
    %1545 = vmatpush.msra.mxu0 0.0
    %1546 = vmatpush.msra.mxu0 0.0
    %1547 = vmatpush.msra.mxu0 0.0
    %1548 = vmatpush.msra.mxu0 0.0
    %1549 = vmatpush.msra.mxu0 0.0
    %1550 = vmatpush.msra.mxu0 0.0
    %1551 = vmatpush.msra.mxu0 0.0
    %1552 = vmatpush.msra.mxu0 0.0
    %1553 = vmatpush.msra.mxu0 0.0
    %1554 = vmatpush.msra.mxu0 0.0
    %1555 = vmatpush.msra.mxu0 0.0
    %1556 = vmatpush.msra.mxu0 0.0
    %1557 = vmatpush.msra.mxu0 %v1534
    %1558 = vmatpush.msra.mxu0 %v1533
    %1559 = vmatpush.msra.mxu0 %v1532
    %1560 = vmatpush.msra.mxu0 %v1531
    %1561 = vmatmul.f32.gmra.mxu0 %v1540
    %v1562 = vpop.f32.mrf.mxu0
    %v1563 = vadd.f32 %v1537, %v1562
    %1564 = vmatmul.f32.gmra.mxu0 %v1543
    %v1565 = vpop.f32.mrf.mxu0
    %v1566 = vadd.f32 %v1537, %v1565
    %1567 = vdwg.mxu0
    %v1568 = vadd.f32 %v941, %v1563
    %v1569 = vadd.f32 %v942, %v1566
    %v1570 = vsel %vm288, %v1568, 0.0
    %1571 = vadd.xlane.f32.xlu0 %v1570
    %v1572 = vpop.xlane.xlu0 %1571
    %v1573 = vsel %vm288, %v1569, 0.0
    %1574 = vadd.xlane.f32.xlu0 %v1573
    %v1575 = vpop.xlane.xlu0 %1574
    %v1576 = vmul.f32 %v1572, %v888
    %v1577 = vmul.f32 %v1575, %v888
    %v1578 = vmul.f32 %v1568, %v1568
    %v1579 = vmul.f32 %v1569, %v1569
    %v1580 = vsel %vm288, %v1578, 0.0
    %1581 = vadd.xlane.f32.xlu0 %v1580
    %v1582 = vpop.xlane.xlu0 %1581
    %v1583 = vsel %vm288, %v1579, 0.0
    %1584 = vadd.xlane.f32.xlu0 %v1583
    %v1585 = vpop.xlane.xlu0 %1584
    %v1586 = vmul.f32 %v1582, %v888
    %v1587 = vmul.f32 %v1585, %v888
    %v1588 = vmul.f32 %v1576, %v1576
    %v1589 = vmul.f32 %v1577, %v1577
    %v1590 = vsub.f32 %v1586, %v1588
    %v1591 = vsub.f32 %v1587, %v1589
    %v1592 = vsub.f32 %v1568, %v1576
    %v1593 = vsub.f32 %v1569, %v1577
    %v1594 = vadd.f32 %v1590, 1e-05
    %v1595 = vadd.f32 %v1591, 1e-05
    %v1596 = vrsqrt.pop %v1594
    %v1597 = vmul.f32 %v1596, %v1594
    %v1598 = vmul.f32 %v1597, %v1596
    %v1599 = vmul.f32 0.5, %v1598
    %v1600 = vsub.f32 1.5, %v1599
    %v1601 = vmul.f32 %v1596, %v1600
    %vm1602 = vweird.f32 %v1594
    %vm1603 = vweird.f32 %v1596
    %vm1604 = vmor %vm1602, %vm1603
    %v1605 = vsel %vm1604, %v1596, %v1601
    %v1606 = vrsqrt.pop %v1595
    %v1607 = vmul.f32 %v1606, %v1595
    %v1608 = vmul.f32 %v1607, %v1606
    %v1609 = vmul.f32 0.5, %v1608
    %v1610 = vsub.f32 1.5, %v1609
    %v1611 = vmul.f32 %v1606, %v1610
    %vm1612 = vweird.f32 %v1595
    %vm1613 = vweird.f32 %v1606
    %vm1614 = vmor %vm1612, %vm1613
    %v1615 = vsel %vm1614, %v1606, %v1611
    %v1616 = vmul.f32 %v1592, %v1605
    %v1617 = vmul.f32 %v1593, %v1615
    %s1618 = scalar_lea.vmem [#allocation20], 1
    %v1619 = vld [vmem:[%s1618] sm:$0x1]
    %v1621 = vperm.slane %v1619, 0
    %v1623 = vmul.f32 %v1616, %v1621
    %v1624 = vmul.f32 %v1617, %v1621
    %s1625 = scalar_lea.vmem [#allocation22], 1
    %v1626 = vld [vmem:[%s1625] sm:$0x1]
    %v1628 = vperm.slane %v1626, 0
    %v1630 = vadd.f32 %v1623, %v1628
    %v1631 = vadd.f32 %v1624, %v1628
    %v1632 = vld [vmem:[#allocation16] sm:$0xff]
    %v1633 = vld [vmem:[#allocation16 + $0x8] sm:$0xff]
    %v1634 = vld [vmem:[#allocation16 + $0x10] sm:$0xff]
    %v1635 = vld [vmem:[#allocation16 + $0x18] sm:$0xff]
    %v1636 = vld [vmem:[#allocation17] sm:$0x1]
    %v1638 = vperm.slane %v1636, 0
    %v1641 = vsel %vm288, %v1630, 0
    %v1644 = vsel %vm288, %v1631, 0
    %1646 = vmatpush.msra.mxu0 0.0
    %1647 = vmatpush.msra.mxu0 0.0
    %1648 = vmatpush.msra.mxu0 0.0
    %1649 = vmatpush.msra.mxu0 0.0
    %1650 = vmatpush.msra.mxu0 0.0
    %1651 = vmatpush.msra.mxu0 0.0
    %1652 = vmatpush.msra.mxu0 0.0
    %1653 = vmatpush.msra.mxu0 0.0
    %1654 = vmatpush.msra.mxu0 0.0
    %1655 = vmatpush.msra.mxu0 0.0
    %1656 = vmatpush.msra.mxu0 0.0
    %1657 = vmatpush.msra.mxu0 0.0
    %1658 = vmatpush.msra.mxu0 %v1635
    %1659 = vmatpush.msra.mxu0 %v1634
    %1660 = vmatpush.msra.mxu0 %v1633
    %1661 = vmatpush.msra.mxu0 %v1632
    %1662 = vmatmul.f32.gmra.mxu0 %v1641
    %v1663 = vpop.f32.mrf.mxu0
    %v1664 = vadd.f32 %v1638, %v1663
    %1665 = vmatmul.f32.gmra.mxu0 %v1644
    %v1666 = vpop.f32.mrf.mxu0
    %v1667 = vadd.f32 %v1638, %v1666
    %1668 = vdwg.mxu0
    %v1669 = vmax.f32 %v1664, 0.0
    %v1670 = vmax.f32 %v1667, 0.0
    %v1671 = vld [vmem:[%s14] sm:$0xff]
    %v1672 = vld [vmem:[%s14 + $0x8] sm:$0xff]
    %v1673 = vld [vmem:[%s14 + $0x10] sm:$0xff]
    %v1674 = vld [vmem:[%s14 + $0x18] sm:$0xff]
    %v1675 = vld [vmem:[%s14 + $0x20] sm:$0xff]
    %v1676 = vld [vmem:[%s14 + $0x28] sm:$0xff]
    %v1677 = vld [vmem:[%s14 + $0x30] sm:$0xff]
    %v1678 = vld [vmem:[%s14 + $0x38] sm:$0xff]
    %v1679 = vld [vmem:[#allocation19] sm:$0x1]
    %v1681 = vperm.slane %v1679, 0
    %vm1683 = vcmask 523264
    %v1685 = vsel %vm1683, %v1669, 0
    %v1688 = vsel %vm1683, %v1670, 0
    %1690 = vmatpush.msra.mxu0 0.0
    %1691 = vmatpush.msra.mxu0 0.0
    %1692 = vmatpush.msra.mxu0 0.0
    %1693 = vmatpush.msra.mxu0 0.0
    %1694 = vmatpush.msra.mxu0 0.0
    %1695 = vmatpush.msra.mxu0 0.0
    %1696 = vmatpush.msra.mxu0 0.0
    %1697 = vmatpush.msra.mxu0 0.0
    %1698 = vmatpush.msra.mxu0 %v1678
    %1699 = vmatpush.msra.mxu0 %v1677
    %1700 = vmatpush.msra.mxu0 %v1676
    %1701 = vmatpush.msra.mxu0 %v1675
    %1702 = vmatpush.msra.mxu0 %v1674
    %1703 = vmatpush.msra.mxu0 %v1673
    %1704 = vmatpush.msra.mxu0 %v1672
    %1705 = vmatpush.msra.mxu0 %v1671
    %1706 = vmatmul.f32.gmra.mxu0 %v1685
    %v1707 = vpop.f32.mrf.mxu0
    %v1708 = vadd.f32 %v1681, %v1707
    %1709 = vmatmul.f32.gmra.mxu0 %v1688
    %v1710 = vpop.f32.mrf.mxu0
    %v1711 = vadd.f32 %v1681, %v1710
    %1712 = vdwg.mxu0
    %v1713 = vadd.f32 %v1630, %v1708
    %v1714 = vadd.f32 %v1631, %v1711
    %v1715 = vsel %vm288, %v1713, 0.0
    %1716 = vadd.xlane.f32.xlu0 %v1715
    %v1717 = vpop.xlane.xlu0 %1716
    %v1718 = vsel %vm288, %v1714, 0.0
    %1719 = vadd.xlane.f32.xlu0 %v1718
    %v1720 = vpop.xlane.xlu0 %1719
    %v1721 = vmul.f32 %v1717, %v888
    %v1722 = vmul.f32 %v1720, %v888
    %v1723 = vmul.f32 %v1713, %v1713
    %v1724 = vmul.f32 %v1714, %v1714
    %v1725 = vsel %vm288, %v1723, 0.0
    %1726 = vadd.xlane.f32.xlu0 %v1725
    %v1727 = vpop.xlane.xlu0 %1726
    %v1728 = vsel %vm288, %v1724, 0.0
    %1729 = vadd.xlane.f32.xlu0 %v1728
    %v1730 = vpop.xlane.xlu0 %1729
    %v1731 = vmul.f32 %v1727, %v888
    %v1732 = vmul.f32 %v1730, %v888
    %v1733 = vmul.f32 %v1721, %v1721
    %v1734 = vmul.f32 %v1722, %v1722
    %v1735 = vsub.f32 %v1731, %v1733
    %v1736 = vsub.f32 %v1732, %v1734
    %v1737 = vsub.f32 %v1713, %v1721
    %v1738 = vsub.f32 %v1714, %v1722
    %v1739 = vadd.f32 %v1735, 1e-05
    %v1740 = vadd.f32 %v1736, 1e-05
    %v1741 = vrsqrt.pop %v1739
    %v1742 = vmul.f32 %v1741, %v1739
    %v1743 = vmul.f32 %v1742, %v1741
    %v1744 = vmul.f32 0.5, %v1743
    %v1745 = vsub.f32 1.5, %v1744
    %v1746 = vmul.f32 %v1741, %v1745
    %vm1747 = vweird.f32 %v1739
    %vm1748 = vweird.f32 %v1741
    %vm1749 = vmor %vm1747, %vm1748
    %v1750 = vsel %vm1749, %v1741, %v1746
    %v1751 = vrsqrt.pop %v1740
    %v1752 = vmul.f32 %v1751, %v1740
    %v1753 = vmul.f32 %v1752, %v1751
    %v1754 = vmul.f32 0.5, %v1753
    %v1755 = vsub.f32 1.5, %v1754
    %v1756 = vmul.f32 %v1751, %v1755
    %vm1757 = vweird.f32 %v1740
    %vm1758 = vweird.f32 %v1751
    %vm1759 = vmor %vm1757, %vm1758
    %v1760 = vsel %vm1759, %v1751, %v1756
    %v1761 = vmul.f32 %v1737, %v1750
    %v1762 = vmul.f32 %v1738, %v1760
    %s1763 = scalar_lea.vmem [#allocation20], 2
    %v1764 = vld [vmem:[%s1763] sm:$0x1]
    %v1766 = vperm.slane %v1764, 0
    %v1768 = vmul.f32 %v1761, %v1766
    %v1769 = vmul.f32 %v1762, %v1766
    %s1770 = scalar_lea.vmem [#allocation22], 2
    %v1771 = vld [vmem:[%s1770] sm:$0x1]
    %v1773 = vperm.slane %v1771, 0
    %v1775 = vadd.f32 %v1768, %v1773
    %v1776 = vadd.f32 %v1769, %v1773
    %1777 = vst.msk [vmem:[#allocation25] sm:$0xff] %vm288, %v1775
    %1778 = vst.msk [vmem:[#allocation25 + $0x8] sm:$0xff] %vm288, %v1776
    // Predicated region
    $region138: #{decoder_forward.1} parent=1 // pred_check
      _
    $region139: #{decoder_forward.1} parent=1 // pred_check_branch
      %1780 = sbr.rel (0) target = $region141
    $region140: #{decoder_forward.1} parent=1 // pred_region
      %1782 = vsyncadd [#allocation4], 0
      %s1783 = sshll.u32 [#allocation25], 4
      %s1784 = int_to_ptr.vmem [resolvable:$true] %s1783
      %s1785 = sshll.u32 %s20, 4
      %s1786 = int_to_ptr.hbm [resolvable:$true] %s1785
      %1791 = dma.vmem_to_hbm [thread:$0]  %s1784, 256, %s1786, [#allocation4], 128, 128, 8
    $region141: #{decoder_forward.1} parent=1 // pred_fallthru
      _
    // Predicated region
    $region142: #{decoder_forward.1} parent=1 // pred_check
      _
    $region143: #{decoder_forward.1} parent=1 // pred_check_branch
      %1793 = sbr.rel (0) target = $region145
    $region144: #{decoder_forward.1} parent=1 // pred_region
      %1795 = dma.done [#allocation4], 256
    $region145: #{decoder_forward.1} parent=1 // pred_fallthru
      _
    %1796 = vsyncpa [#allocation3], 1
    %1797 = vsyncpa [#allocation6], 1
    %1798 = vsyncpa [#allocation9], 1
    %1799 = vsyncpa [#allocation12], 1
    %1800 = vsyncpa [#allocation15], 1
    %1801 = vsyncpa [#allocation18], 1
    %1802 = vsyncpa [#allocation21], 1
    %1803 = vsyncpa [#allocation24], 1
    %1804 = vsyncpa [#allocation4], 1

</llo_original>
